<compile_context>
chip_gen: v5e
topology: v5e:2x2
jax: 0.10.0
libtpu: 0.0.40
codegen_flags: <defaults>
</compile_context>

<pallas_src>
from functools import partial

import jax
import jax.numpy as jnp
from jax.experimental import pallas as pl
from jax.experimental.pallas import tpu as pltpu

BP = 8  # padded batch rows per group (= vreg sublanes)


# ----------------------------------------------------------------------------
# Probe pltpu.roll's convention once (True == matches jnp.roll).
# ----------------------------------------------------------------------------
def probe_roll_is_forward():
    def k(o_ref):
        v = jax.lax.broadcasted_iota(jnp.int32, (8, 128), 1)
        o_ref[...] = pltpu.roll(v, 32, 1)

    try:
        r = pl.pallas_call(
            k, out_shape=jax.ShapeDtypeStruct((8, 128), jnp.int32))()
        return int(r[0, 32]) == 0  # lane 0 moved to lane 32 -> jnp.roll convention
    except Exception:
        return True


# ----------------------------------------------------------------------------
# Fused kernel builder.
# ----------------------------------------------------------------------------
def make_fused_kernel(num_layers, seq_len, hidden, roll_fwd):
    """num_layers-deep LSTM over seq_len steps (unrolled, wavefront order)
    + Linear(H,1024)->ReLU->Linear(1024,1) head.

    Kernel gate column order is [i, f, o, g]; the g (tanh) columns are
    pre-scaled by 2 on the host so a single sigmoid + post scale/shift covers
    all four gates."""
    H = hidden
    G = 4 * H

    def to_slot0(v, s):   # bring H-lane slot s to lanes [0:H)
        if s == 0:
            return v
        shift = ((4 - s) * H) % G if roll_fwd else (s * H) % G
        return pltpu.roll(v, shift, 1)

    def from_slot0(v, s):  # move lanes [0:H) to slot s
        if s == 0:
            return v
        shift = (s * H) % G if roll_fwd else ((4 - s) * H) % G
        return pltpu.roll(v, shift, 1)

    def kernel(*refs):
        x_ref = refs[0]                                   # (1, T*BP, I)
        wih0_ref, b0_ref, whh0_ref = refs[1], refs[2], refs[3]
        layer_refs = refs[4:4 + 2 * (num_layers - 1)]     # per layer>=1: wcat, bias
        w1_ref, b1_ref, w2_ref, b2_ref = refs[
            4 + 2 * (num_layers - 1):8 + 2 * (num_layers - 1)]
        out_ref = refs[-1]                                # (1, BP, 1)

        f32 = jnp.float32
        bf16 = jnp.bfloat16

        # Hoisted per-lane constants (built once, outside the unrolled loops).
        lane = jax.lax.broadcasted_iota(jnp.int32, (BP, G), 1)
        post_scale = jnp.where(lane >= 3 * H, 2.0, 1.0).astype(f32)
        post_shift = jnp.where(lane >= 3 * H, -1.0, 0.0).astype(f32)
        h_mask = lane < H

        # Hoisted non-recurrent layer-0 input projection (+ bias), f32, once.
        x2d = x_ref[0]                                    # (T*BP, I)
        gx0 = jnp.dot(x2d, wih0_ref[...], preferred_element_type=f32) + b0_ref[...]

        whh0 = whh0_ref[...]                                              # (G,G) bf16
        wcats = [layer_refs[2 * i][...] for i in range(num_layers - 1)]   # (G,G) bf16
        biases = [jnp.broadcast_to(layer_refs[2 * i + 1][...], (BP, G))
                  for i in range(num_layers - 1)]                         # hoisted bcast

        h = [jnp.zeros((BP, G), f32) for _ in range(num_layers)]
        c = [jnp.zeros((BP, G), f32) for _ in range(num_layers)]

        def cell(pre, c_prev):
            # One full-vreg sigmoid; g slot becomes tanh via 2*sigmoid(2x)-1
            # (the x2 is folded into the g weight/bias columns on the host).
            s = jax.nn.sigmoid(pre)
            act = s * post_scale + post_shift             # [ i | f | o | tanh(g) ]
            f_al = to_slot0(act, 1)                       # XLU rolls, no lane slices
            o_al = to_slot0(act, 2)
            g_al = to_slot0(act, 3)
            c_new = f_al * c_prev + act * g_al            # valid in lanes [0:H)
            h_new = jnp.where(h_mask, o_al * jnp.tanh(c_new), 0.0)
            return h_new, c_new

        # Wavefront order: cell (layer l, step t) at anti-diagonal d = t + l;
        # within a diagonal, deeper layers first (they consume the not-yet-
        # updated h of the layer below).  Pure reordering of independent work.
        for d in range(seq_len + num_layers - 1):
            for l in range(num_layers - 1, -1, -1):
                t = d - l
                if not (0 <= t < seq_len):
                    continue
                if l == 0:
                    pre = gx0[t * BP:(t + 1) * BP, :] + jnp.dot(
                        h[0].astype(bf16), whh0, preferred_element_type=f32)
                else:
                    # lhs = [ h_{l-1,t} | h_{l,t-1} | 0 | 0 ]  -> single fused dot.
                    lhs = h[l - 1] + from_slot0(h[l], 1)
                    pre = jnp.dot(lhs.astype(bf16), wcats[l - 1],
                                  preferred_element_type=f32) + biases[l - 1]
                h[l], c[l] = cell(pre, c[l])

        # Fused MLP head on the final hidden state (stays in VMEM, f32).
        z = jnp.dot(h[-1], w1_ref[...], preferred_element_type=f32) + b1_ref[...]
        z = jnp.maximum(z, 0.0)
        out = jnp.sum(z * w2_ref[...], axis=-1, keepdims=True) + b2_ref[...]
        out_ref[0] = out.astype(out_ref.dtype)

    return kernel


# ----------------------------------------------------------------------------
# Host wrapper.
# ----------------------------------------------------------------------------
def _cdiv(a, b):
    return (a + b - 1) // b


@partial(jax.jit, static_argnames=("roll_fwd",))
def lstm_linear_forward(x, kparams, *, roll_fwd=True):
    """x: (B, 1, I, T) float32. kparams: output of prepare_kernel_params()."""
    # PyTorch: squeeze(1) -> (B, I, T); permute(0,2,1) -> (B, T, I).
    xb = jnp.transpose(jnp.squeeze(x, axis=1), (0, 2, 1))        # (B, T, I)
    B, T, I = xb.shape
    H = kparams["whh0"].shape[0] // 4
    L = 1 + len(kparams["wcat"])

    # Pad batch to a multiple of 8 sublanes and group as (nB, T*8, I),
    # row t*8 + j = sample (group*8 + j) at time t.
    nB = _cdiv(B, BP)
    Bp = nB * BP
    xp = jnp.pad(xb, ((0, Bp - B), (0, 0), (0, 0)))
    xg = xp.reshape(nB, BP, T, I).transpose(0, 2, 1, 3).reshape(nB, T * BP, I)

    args = [xg, kparams["wih0"], kparams["b0"], kparams["whh0"]]
    for wcat, bl in zip(kparams["wcat"], kparams["b_rest"]):
        args += [wcat, bl]
    args += [kparams["w1"], kparams["b1"], kparams["w2_row"], kparams["b2"]]

    # Explicit blocked specs: every operand gets a full-size VMEM-resident block.
    in_specs = [pl.BlockSpec((1, T * BP, I), lambda b: (b, 0, 0))]
    in_specs += [pl.BlockSpec(a.shape, lambda b: (0, 0)) for a in args[1:]]
    out_specs = pl.BlockSpec((1, BP, 1), lambda b: (b, 0, 0))

    out = pl.pallas_call(
        make_fused_kernel(L, T, H, roll_fwd),
        grid=(nB,),
        in_specs=in_specs,
        out_specs=out_specs,
        out_shape=jax.ShapeDtypeStruct((nB, BP, 1), jnp.float32),
        compiler_params=pltpu.CompilerParams(
            dimension_semantics=("parallel",)),   # batch groups split across TCs (v7x)
    )(*args)

    return out.reshape(Bp, 1)[:B]


# ----------------------------------------------------------------------------
# Parameters: PyTorch-order init, plus kernel-layout preparation.
# ----------------------------------------------------------------------------
def init_params(key, input_size, hidden_size, num_layers):
    """PyTorch-style init; gate order i, f, g, o; weights stored transposed."""
    params = {"lstm": []}
    k_lstm = 1.0 / jnp.sqrt(hidden_size)
    for layer in range(num_layers):
        in_sz = input_size if layer == 0 else hidden_size
        key, k1, k2, k3, k4 = jax.random.split(key, 5)
        wih = jax.random.uniform(k1, (4 * hidden_size, in_sz), jnp.float32, -k_lstm, k_lstm)
        whh = jax.random.uniform(k2, (4 * hidden_size, hidden_size), jnp.float32, -k_lstm, k_lstm)
        bih = jax.random.uniform(k3, (4 * hidden_size,), jnp.float32, -k_lstm, k_lstm)
        bhh = jax.random.uniform(k4, (4 * hidden_size,), jnp.float32, -k_lstm, k_lstm)
        params["lstm"].append({
            "wih_t": wih.T,                    # (in_sz, 4H), gate order i,f,g,o
            "whh_t": whh.T,                    # (H, 4H)
            "b": (bih + bhh).reshape(1, -1),   # (1, 4H) fused bias
        })
    key, k1, k2, k3, k4 = jax.random.split(key, 5)
    k_l1 = 1.0 / jnp.sqrt(hidden_size)
    k_l2 = 1.0 / jnp.sqrt(1024.0)
    params["w1"] = jax.random.uniform(k1, (hidden_size, 1024), jnp.float32, -k_l1, k_l1)
    params["b1"] = jax.random.uniform(k2, (1, 1024), jnp.float32, -k_l1, k_l1)
    params["w2_row"] = jax.random.uniform(k3, (1, 1024), jnp.float32, -k_l2, k_l2)  # linear2.weight
    params["b2"] = jax.random.uniform(k4, (1, 1), jnp.float32, -k_l2, k_l2)
    return params


def prepare_kernel_params(params):
    """One-time (outside jit) re-layout for the kernel:
       * gate columns (i,f,g,o) -> (i,f,o,g) with the g (tanh) block scaled by 2,
       * recurrent weights zero-padded to 4H rows and cast to bf16,
       * layers >= 1 get a fused [Wih; Whh] weight, head W1 zero-padded to 4H rows."""
    lstm = params["lstm"]
    H = lstm[0]["whh_t"].shape[0]
    G = 4 * H

    def prep(w):  # torch (i,f,g,o) columns -> (i,f,o,g), g columns * 2
        return jnp.concatenate(
            [w[..., :2 * H], w[..., 3 * H:], 2.0 * w[..., 2 * H:3 * H]], axis=-1)

    def pad_rows(w):
        return jnp.pad(w, ((0, G - w.shape[0]), (0, 0)))

    kp = {
        "wih0": prep(lstm[0]["wih_t"]).astype(jnp.float32),             # (I, 4H)
        "b0":   prep(lstm[0]["b"]).astype(jnp.float32),                 # (1, 4H)
        "whh0": pad_rows(prep(lstm[0]["whh_t"])).astype(jnp.bfloat16),  # (4H, 4H)
        "wcat": [],
        "b_rest": [],
        "w1": jnp.pad(params["w1"], ((0, G - H), (0, 0))).astype(jnp.float32),  # (4H, 1024)
        "b1": params["b1"].astype(jnp.float32),
        "w2_row": params["w2_row"].astype(jnp.float32),
        "b2": params["b2"].astype(jnp.float32),
    }
    for lp in lstm[1:]:
        wcat = jnp.concatenate([prep(lp["wih_t"]), prep(lp["whh_t"])], axis=0)  # (2H, 4H)
        kp["wcat"].append(pad_rows(wcat).astype(jnp.bfloat16))                  # (4H, 4H)
        kp["b_rest"].append(prep(lp["b"]).astype(jnp.float32))                  # (1, 4H)
    return kp


# ----------------------------------------------------------------------------
# Pure-JAX reference (PyTorch gate order, f32) for a correctness cross-check.
# ----------------------------------------------------------------------------
def lstm_linear_reference(x, params):
    xb = jnp.transpose(jnp.squeeze(x, axis=1), (0, 2, 1))  # (B, T, I)
    B, T, _ = xb.shape
    h_seq = xb
    for lp in params["lstm"]:
        H = lp["whh_t"].shape[0]
        h = jnp.zeros((B, H), jnp.float32)
        c = jnp.zeros((B, H), jnp.float32)
        outs = []
        for t in range(T):
            gates = h_seq[:, t, :] @ lp["wih_t"] + h @ lp["whh_t"] + lp["b"]
            i_g = jax.nn.sigmoid(gates[:, 0 * H:1 * H])
            f_g = jax.nn.sigmoid(gates[:, 1 * H:2 * H])
            g_g = jnp.tanh(gates[:, 2 * H:3 * H])
            o_g = jax.nn.sigmoid(gates[:, 3 * H:4 * H])
            c = f_g * c + i_g * g_g
            h = o_g * jnp.tanh(c)
            outs.append(h)
        h_seq = jnp.stack(outs, axis=1)
    z = jnp.maximum(h_seq[:, -1, :] @ params["w1"] + params["b1"], 0.0)
    return z @ params["w2_row"].T + params["b2"]


if __name__ == "__main__":
    B, INPUT_SIZE, SEQ_LEN, HIDDEN, NUM_LAYERS = 2, 8, 8, 32, 2

    key = jax.random.PRNGKey(0)
    key_x, key_p = jax.random.split(key)
    x = jax.random.normal(key_x, (B, 1, INPUT_SIZE, SEQ_LEN), jnp.float32)
    params = init_params(key_p, INPUT_SIZE, HIDDEN, NUM_LAYERS)
    kparams = prepare_kernel_params(params)

    roll_fwd = probe_roll_is_forward()

    out = lstm_linear_forward(x, kparams, roll_fwd=roll_fwd)
    jax.block_until_ready(out)

    assert out.shape == (B, 1), out.shape
    assert out.dtype == jnp.float32

    ref = lstm_linear_reference(x, params)
    # Tolerance slightly widened vs. pure-f32 (recurrent matmuls use bf16 MXU
    # operands with f32 accumulation, per perf review).
    assert jnp.allclose(out, ref, atol=5e-3, rtol=5e-3), (out, ref)

    print("KERNEL_OK")
</pallas_src>

<mosaic_0001>
module attributes {stable_mosaic.version = 11 : i64} {
  func.func @kernel(%arg0: i32, %arg1: memref<1x64x8xf32, #tpu.memory_space<vmem>>, %arg2: memref<8x128xf32, #tpu.memory_space<vmem>>, %arg3: memref<1x128xf32, #tpu.memory_space<vmem>>, %arg4: memref<128x128xbf16, #tpu.memory_space<vmem>>, %arg5: memref<128x128xbf16, #tpu.memory_space<vmem>>, %arg6: memref<1x128xf32, #tpu.memory_space<vmem>>, %arg7: memref<128x1024xf32, #tpu.memory_space<vmem>>, %arg8: memref<1x1024xf32, #tpu.memory_space<vmem>>, %arg9: memref<1x1024xf32, #tpu.memory_space<vmem>>, %arg10: memref<1x1xf32, #tpu.memory_space<vmem>>, %arg11: memref<1x8x1xf32, #tpu.memory_space<vmem>>) attributes {dimension_semantics = [#tpu.dimension_semantics<parallel>], iteration_bounds = array<i64: 1>, scalar_prefetch = 0 : i64, scratch_operands = 0 : i64, tpu.core_type = #tpu.core_type<tc>, window_params = [{transform_indices = @transform_0, window_bounds = array<i64: 1, 64, 8>}, {pipeline_mode = #tpu.pipeline_mode<synchronous>, transform_indices = @transform_1, window_bounds = array<i64: 8, 128>}, {pipeline_mode = #tpu.pipeline_mode<synchronous>, transform_indices = @transform_2, window_bounds = array<i64: 1, 128>}, {pipeline_mode = #tpu.pipeline_mode<synchronous>, transform_indices = @transform_3, window_bounds = array<i64: 128, 128>}, {pipeline_mode = #tpu.pipeline_mode<synchronous>, transform_indices = @transform_4, window_bounds = array<i64: 128, 128>}, {pipeline_mode = #tpu.pipeline_mode<synchronous>, transform_indices = @transform_5, window_bounds = array<i64: 1, 128>}, {pipeline_mode = #tpu.pipeline_mode<synchronous>, transform_indices = @transform_6, window_bounds = array<i64: 128, 1024>}, {pipeline_mode = #tpu.pipeline_mode<synchronous>, transform_indices = @transform_7, window_bounds = array<i64: 1, 1024>}, {pipeline_mode = #tpu.pipeline_mode<synchronous>, transform_indices = @transform_8, window_bounds = array<i64: 1, 1024>}, {pipeline_mode = #tpu.pipeline_mode<synchronous>, transform_indices = @transform_9, window_bounds = array<i64: 1, 1>}, {transform_indices = @transform_10, window_bounds = array<i64: 1, 8, 1>}]} {
    %0 = tpu.iota {dimensions = array<i32: 1>} : vector<8x128xi32>
    %c96_i32 = arith.constant 96 : i32
    %1 = vector.broadcast %c96_i32 : i32 to vector<8x128xi32>
    %2 = arith.cmpi sge, %0, %1 : vector<8x128xi32>
    %cst = arith.constant 2.000000e+00 : f32
    %cst_0 = arith.constant 1.000000e+00 : f32
    %3 = vector.broadcast %cst : f32 to vector<8x128xf32>
    %4 = vector.broadcast %cst_0 : f32 to vector<8x128xf32>
    %5 = arith.select %2, %3, %4 : vector<8x128xi1>, vector<8x128xf32>
    %c96_i32_1 = arith.constant 96 : i32
    %6 = vector.broadcast %c96_i32_1 : i32 to vector<8x128xi32>
    %7 = arith.cmpi sge, %0, %6 : vector<8x128xi32>
    %cst_2 = arith.constant -1.000000e+00 : f32
    %cst_3 = arith.constant 0.000000e+00 : f32
    %8 = vector.broadcast %cst_2 : f32 to vector<8x128xf32>
    %9 = vector.broadcast %cst_3 : f32 to vector<8x128xf32>
    %10 = arith.select %7, %8, %9 : vector<8x128xi1>, vector<8x128xf32>
    %c32_i32 = arith.constant 32 : i32
    %11 = vector.broadcast %c32_i32 : i32 to vector<8x128xi32>
    %12 = arith.cmpi slt, %0, %11 : vector<8x128xi32>
    %c0 = arith.constant 0 : index
    %c0_4 = arith.constant 0 : index
    %c0_5 = arith.constant 0 : index
    %13 = vector.load %arg1[%c0, %c0_4, %c0_5] : memref<1x64x8xf32, #tpu.memory_space<vmem>>, vector<1x64x8xf32>
    %14 = vector.shape_cast %13 : vector<1x64x8xf32> to vector<64x8xf32>
    %c0_6 = arith.constant 0 : index
    %c0_7 = arith.constant 0 : index
    %15 = vector.load %arg2[%c0_6, %c0_7] : memref<8x128xf32, #tpu.memory_space<vmem>>, vector<8x128xf32>
    %cst_8 = arith.constant dense<0.000000e+00> : vector<64x128xf32>
    %16 = tpu.matmul %14, %15, %cst_8 {dimension_numbers = #tpu.dot_dimension_numbers<[1], [0], [0], [1], [0, 0, 1, 1], [], []>} : vector<64x8xf32>, vector<8x128xf32>, vector<64x128xf32> -> vector<64x128xf32>
    %c0_9 = arith.constant 0 : index
    %c0_10 = arith.constant 0 : index
    %17 = vector.load %arg3[%c0_9, %c0_10] : memref<1x128xf32, #tpu.memory_space<vmem>>, vector<1x128xf32>
    %18 = vector.broadcast %17 : vector<1x128xf32> to vector<64x128xf32>
    %19 = arith.addf %16, %18 : vector<64x128xf32>
    %c0_11 = arith.constant 0 : index
    %c0_12 = arith.constant 0 : index
    %20 = vector.load %arg4[%c0_11, %c0_12] : memref<128x128xbf16, #tpu.memory_space<vmem>>, vector<128x128xbf16>
    %c0_13 = arith.constant 0 : index
    %c0_14 = arith.constant 0 : index
    %21 = vector.load %arg5[%c0_13, %c0_14] : memref<128x128xbf16, #tpu.memory_space<vmem>>, vector<128x128xbf16>
    %c0_15 = arith.constant 0 : index
    %c0_16 = arith.constant 0 : index
    %22 = vector.load %arg6[%c0_15, %c0_16] : memref<1x128xf32, #tpu.memory_space<vmem>>, vector<1x128xf32>
    %23 = vector.shape_cast %22 : vector<1x128xf32> to vector<1x128xf32>
    %24 = vector.broadcast %23 : vector<1x128xf32> to vector<8x128xf32>
    %cst_17 = arith.constant 0.000000e+00 : f32
    %25 = vector.broadcast %cst_17 : f32 to vector<8x128xf32>
    %cst_18 = arith.constant 0.000000e+00 : f32
    %26 = vector.broadcast %cst_18 : f32 to vector<8x128xf32>
    %cst_19 = arith.constant 0.000000e+00 : f32
    %27 = vector.broadcast %cst_19 : f32 to vector<8x128xf32>
    %cst_20 = arith.constant 0.000000e+00 : f32
    %28 = vector.broadcast %cst_20 : f32 to vector<8x128xf32>
    %29 = vector.extract_strided_slice %19 {offsets = [0, 0], sizes = [8, 128], strides = [1, 1]} : vector<64x128xf32> to vector<8x128xf32>
    %30 = arith.truncf %25 : vector<8x128xf32> to vector<8x128xbf16>
    %cst_21 = arith.constant dense<0.000000e+00> : vector<8x128xf32>
    %31 = tpu.matmul %30, %20, %cst_21 {dimension_numbers = #tpu.dot_dimension_numbers<[1], [0], [0], [1], [0, 0, 1, 1], [], []>} : vector<8x128xbf16>, vector<128x128xbf16>, vector<8x128xf32> -> vector<8x128xf32>
    %32 = arith.addf %29, %31 : vector<8x128xf32>
    %33 = arith.negf %32 : vector<8x128xf32>
    %34 = math.exp %33 : vector<8x128xf32>
    %cst_22 = arith.constant 1.000000e+00 : f32
    %35 = vector.broadcast %cst_22 : f32 to vector<8x128xf32>
    %36 = arith.addf %35, %34 : vector<8x128xf32>
    %37 = arith.divf %35, %36 : vector<8x128xf32>
    %38 = arith.mulf %37, %5 : vector<8x128xf32>
    %39 = arith.addf %38, %10 : vector<8x128xf32>
    %c96_i32_23 = arith.constant 96 : i32
    %40 = tpu.dynamic_rotate %39 by %c96_i32_23 dim 1 : vector<8x128xf32>, i32 -> vector<8x128xf32>
    %c64_i32 = arith.constant 64 : i32
    %41 = tpu.dynamic_rotate %39 by %c64_i32 dim 1 : vector<8x128xf32>, i32 -> vector<8x128xf32>
    %c32_i32_24 = arith.constant 32 : i32
    %42 = tpu.dynamic_rotate %39 by %c32_i32_24 dim 1 : vector<8x128xf32>, i32 -> vector<8x128xf32>
    %43 = arith.mulf %40, %27 : vector<8x128xf32>
    %44 = arith.mulf %39, %42 : vector<8x128xf32>
    %45 = arith.addf %43, %44 : vector<8x128xf32>
    %46 = math.tanh %45 : vector<8x128xf32>
    %47 = arith.mulf %41, %46 : vector<8x128xf32>
    %cst_25 = arith.constant 0.000000e+00 : f32
    %48 = vector.broadcast %cst_25 : f32 to vector<8x128xf32>
    %49 = arith.select %12, %47, %48 : vector<8x128xi1>, vector<8x128xf32>
    %c32_i32_26 = arith.constant 32 : i32
    %50 = tpu.dynamic_rotate %26 by %c32_i32_26 dim 1 : vector<8x128xf32>, i32 -> vector<8x128xf32>
    %51 = arith.addf %49, %50 : vector<8x128xf32>
    %52 = arith.truncf %51 : vector<8x128xf32> to vector<8x128xbf16>
    %cst_27 = arith.constant dense<0.000000e+00> : vector<8x128xf32>
    %53 = tpu.matmul %52, %21, %cst_27 {dimension_numbers = #tpu.dot_dimension_numbers<[1], [0], [0], [1], [0, 0, 1, 1], [], []>} : vector<8x128xbf16>, vector<128x128xbf16>, vector<8x128xf32> -> vector<8x128xf32>
    %54 = arith.addf %53, %24 : vector<8x128xf32>
    %55 = arith.negf %54 : vector<8x128xf32>
    %56 = math.exp %55 : vector<8x128xf32>
    %cst_28 = arith.constant 1.000000e+00 : f32
    %57 = vector.broadcast %cst_28 : f32 to vector<8x128xf32>
    %58 = arith.addf %57, %56 : vector<8x128xf32>
    %59 = arith.divf %57, %58 : vector<8x128xf32>
    %60 = arith.mulf %59, %5 : vector<8x128xf32>
    %61 = arith.addf %60, %10 : vector<8x128xf32>
    %c96_i32_29 = arith.constant 96 : i32
    %62 = tpu.dynamic_rotate %61 by %c96_i32_29 dim 1 : vector<8x128xf32>, i32 -> vector<8x128xf32>
    %c64_i32_30 = arith.constant 64 : i32
    %63 = tpu.dynamic_rotate %61 by %c64_i32_30 dim 1 : vector<8x128xf32>, i32 -> vector<8x128xf32>
    %c32_i32_31 = arith.constant 32 : i32
    %64 = tpu.dynamic_rotate %61 by %c32_i32_31 dim 1 : vector<8x128xf32>, i32 -> vector<8x128xf32>
    %65 = arith.mulf %62, %28 : vector<8x128xf32>
    %66 = arith.mulf %61, %64 : vector<8x128xf32>
    %67 = arith.addf %65, %66 : vector<8x128xf32>
    %68 = math.tanh %67 : vector<8x128xf32>
    %69 = arith.mulf %63, %68 : vector<8x128xf32>
    %cst_32 = arith.constant 0.000000e+00 : f32
    %70 = vector.broadcast %cst_32 : f32 to vector<8x128xf32>
    %71 = arith.select %12, %69, %70 : vector<8x128xi1>, vector<8x128xf32>
    %72 = vector.extract_strided_slice %19 {offsets = [8, 0], sizes = [8, 128], strides = [1, 1]} : vector<64x128xf32> to vector<8x128xf32>
    %73 = arith.truncf %49 : vector<8x128xf32> to vector<8x128xbf16>
    %cst_33 = arith.constant dense<0.000000e+00> : vector<8x128xf32>
    %74 = tpu.matmul %73, %20, %cst_33 {dimension_numbers = #tpu.dot_dimension_numbers<[1], [0], [0], [1], [0, 0, 1, 1], [], []>} : vector<8x128xbf16>, vector<128x128xbf16>, vector<8x128xf32> -> vector<8x128xf32>
    %75 = arith.addf %72, %74 : vector<8x128xf32>
    %76 = arith.negf %75 : vector<8x128xf32>
    %77 = math.exp %76 : vector<8x128xf32>
    %cst_34 = arith.constant 1.000000e+00 : f32
    %78 = vector.broadcast %cst_34 : f32 to vector<8x128xf32>
    %79 = arith.addf %78, %77 : vector<8x128xf32>
    %80 = arith.divf %78, %79 : vector<8x128xf32>
    %81 = arith.mulf %80, %5 : vector<8x128xf32>
    %82 = arith.addf %81, %10 : vector<8x128xf32>
    %c96_i32_35 = arith.constant 96 : i32
    %83 = tpu.dynamic_rotate %82 by %c96_i32_35 dim 1 : vector<8x128xf32>, i32 -> vector<8x128xf32>
    %c64_i32_36 = arith.constant 64 : i32
    %84 = tpu.dynamic_rotate %82 by %c64_i32_36 dim 1 : vector<8x128xf32>, i32 -> vector<8x128xf32>
    %c32_i32_37 = arith.constant 32 : i32
    %85 = tpu.dynamic_rotate %82 by %c32_i32_37 dim 1 : vector<8x128xf32>, i32 -> vector<8x128xf32>
    %86 = arith.mulf %83, %45 : vector<8x128xf32>
    %87 = arith.mulf %82, %85 : vector<8x128xf32>
    %88 = arith.addf %86, %87 : vector<8x128xf32>
    %89 = math.tanh %88 : vector<8x128xf32>
    %90 = arith.mulf %84, %89 : vector<8x128xf32>
    %cst_38 = arith.constant 0.000000e+00 : f32
    %91 = vector.broadcast %cst_38 : f32 to vector<8x128xf32>
    %92 = arith.select %12, %90, %91 : vector<8x128xi1>, vector<8x128xf32>
    %c32_i32_39 = arith.constant 32 : i32
    %93 = tpu.dynamic_rotate %71 by %c32_i32_39 dim 1 : vector<8x128xf32>, i32 -> vector<8x128xf32>
    %94 = arith.addf %92, %93 : vector<8x128xf32>
    %95 = arith.truncf %94 : vector<8x128xf32> to vector<8x128xbf16>
    %cst_40 = arith.constant dense<0.000000e+00> : vector<8x128xf32>
    %96 = tpu.matmul %95, %21, %cst_40 {dimension_numbers = #tpu.dot_dimension_numbers<[1], [0], [0], [1], [0, 0, 1, 1], [], []>} : vector<8x128xbf16>, vector<128x128xbf16>, vector<8x128xf32> -> vector<8x128xf32>
    %97 = arith.addf %96, %24 : vector<8x128xf32>
    %98 = arith.negf %97 : vector<8x128xf32>
    %99 = math.exp %98 : vector<8x128xf32>
    %cst_41 = arith.constant 1.000000e+00 : f32
    %100 = vector.broadcast %cst_41 : f32 to vector<8x128xf32>
    %101 = arith.addf %100, %99 : vector<8x128xf32>
    %102 = arith.divf %100, %101 : vector<8x128xf32>
    %103 = arith.mulf %102, %5 : vector<8x128xf32>
    %104 = arith.addf %103, %10 : vector<8x128xf32>
    %c96_i32_42 = arith.constant 96 : i32
    %105 = tpu.dynamic_rotate %104 by %c96_i32_42 dim 1 : vector<8x128xf32>, i32 -> vector<8x128xf32>
    %c64_i32_43 = arith.constant 64 : i32
    %106 = tpu.dynamic_rotate %104 by %c64_i32_43 dim 1 : vector<8x128xf32>, i32 -> vector<8x128xf32>
    %c32_i32_44 = arith.constant 32 : i32
    %107 = tpu.dynamic_rotate %104 by %c32_i32_44 dim 1 : vector<8x128xf32>, i32 -> vector<8x128xf32>
    %108 = arith.mulf %105, %67 : vector<8x128xf32>
    %109 = arith.mulf %104, %107 : vector<8x128xf32>
    %110 = arith.addf %108, %109 : vector<8x128xf32>
    %111 = math.tanh %110 : vector<8x128xf32>
    %112 = arith.mulf %106, %111 : vector<8x128xf32>
    %cst_45 = arith.constant 0.000000e+00 : f32
    %113 = vector.broadcast %cst_45 : f32 to vector<8x128xf32>
    %114 = arith.select %12, %112, %113 : vector<8x128xi1>, vector<8x128xf32>
    %115 = vector.extract_strided_slice %19 {offsets = [16, 0], sizes = [8, 128], strides = [1, 1]} : vector<64x128xf32> to vector<8x128xf32>
    %116 = arith.truncf %92 : vector<8x128xf32> to vector<8x128xbf16>
    %cst_46 = arith.constant dense<0.000000e+00> : vector<8x128xf32>
    %117 = tpu.matmul %116, %20, %cst_46 {dimension_numbers = #tpu.dot_dimension_numbers<[1], [0], [0], [1], [0, 0, 1, 1], [], []>} : vector<8x128xbf16>, vector<128x128xbf16>, vector<8x128xf32> -> vector<8x128xf32>
    %118 = arith.addf %115, %117 : vector<8x128xf32>
    %119 = arith.negf %118 : vector<8x128xf32>
    %120 = math.exp %119 : vector<8x128xf32>
    %cst_47 = arith.constant 1.000000e+00 : f32
    %121 = vector.broadcast %cst_47 : f32 to vector<8x128xf32>
    %122 = arith.addf %121, %120 : vector<8x128xf32>
    %123 = arith.divf %121, %122 : vector<8x128xf32>
    %124 = arith.mulf %123, %5 : vector<8x128xf32>
    %125 = arith.addf %124, %10 : vector<8x128xf32>
    %c96_i32_48 = arith.constant 96 : i32
    %126 = tpu.dynamic_rotate %125 by %c96_i32_48 dim 1 : vector<8x128xf32>, i32 -> vector<8x128xf32>
    %c64_i32_49 = arith.constant 64 : i32
    %127 = tpu.dynamic_rotate %125 by %c64_i32_49 dim 1 : vector<8x128xf32>, i32 -> vector<8x128xf32>
    %c32_i32_50 = arith.constant 32 : i32
    %128 = tpu.dynamic_rotate %125 by %c32_i32_50 dim 1 : vector<8x128xf32>, i32 -> vector<8x128xf32>
    %129 = arith.mulf %126, %88 : vector<8x128xf32>
    %130 = arith.mulf %125, %128 : vector<8x128xf32>
    %131 = arith.addf %129, %130 : vector<8x128xf32>
    %132 = math.tanh %131 : vector<8x128xf32>
    %133 = arith.mulf %127, %132 : vector<8x128xf32>
    %cst_51 = arith.constant 0.000000e+00 : f32
    %134 = vector.broadcast %cst_51 : f32 to vector<8x128xf32>
    %135 = arith.select %12, %133, %134 : vector<8x128xi1>, vector<8x128xf32>
    %c32_i32_52 = arith.constant 32 : i32
    %136 = tpu.dynamic_rotate %114 by %c32_i32_52 dim 1 : vector<8x128xf32>, i32 -> vector<8x128xf32>
    %137 = arith.addf %135, %136 : vector<8x128xf32>
    %138 = arith.truncf %137 : vector<8x128xf32> to vector<8x128xbf16>
    %cst_53 = arith.constant dense<0.000000e+00> : vector<8x128xf32>
    %139 = tpu.matmul %138, %21, %cst_53 {dimension_numbers = #tpu.dot_dimension_numbers<[1], [0], [0], [1], [0, 0, 1, 1], [], []>} : vector<8x128xbf16>, vector<128x128xbf16>, vector<8x128xf32> -> vector<8x128xf32>
    %140 = arith.addf %139, %24 : vector<8x128xf32>
    %141 = arith.negf %140 : vector<8x128xf32>
    %142 = math.exp %141 : vector<8x128xf32>
    %cst_54 = arith.constant 1.000000e+00 : f32
    %143 = vector.broadcast %cst_54 : f32 to vector<8x128xf32>
    %144 = arith.addf %143, %142 : vector<8x128xf32>
    %145 = arith.divf %143, %144 : vector<8x128xf32>
    %146 = arith.mulf %145, %5 : vector<8x128xf32>
    %147 = arith.addf %146, %10 : vector<8x128xf32>
    %c96_i32_55 = arith.constant 96 : i32
    %148 = tpu.dynamic_rotate %147 by %c96_i32_55 dim 1 : vector<8x128xf32>, i32 -> vector<8x128xf32>
    %c64_i32_56 = arith.constant 64 : i32
    %149 = tpu.dynamic_rotate %147 by %c64_i32_56 dim 1 : vector<8x128xf32>, i32 -> vector<8x128xf32>
    %c32_i32_57 = arith.constant 32 : i32
    %150 = tpu.dynamic_rotate %147 by %c32_i32_57 dim 1 : vector<8x128xf32>, i32 -> vector<8x128xf32>
    %151 = arith.mulf %148, %110 : vector<8x128xf32>
    %152 = arith.mulf %147, %150 : vector<8x128xf32>
    %153 = arith.addf %151, %152 : vector<8x128xf32>
    %154 = math.tanh %153 : vector<8x128xf32>
    %155 = arith.mulf %149, %154 : vector<8x128xf32>
    %cst_58 = arith.constant 0.000000e+00 : f32
    %156 = vector.broadcast %cst_58 : f32 to vector<8x128xf32>
    %157 = arith.select %12, %155, %156 : vector<8x128xi1>, vector<8x128xf32>
    %158 = vector.extract_strided_slice %19 {offsets = [24, 0], sizes = [8, 128], strides = [1, 1]} : vector<64x128xf32> to vector<8x128xf32>
    %159 = arith.truncf %135 : vector<8x128xf32> to vector<8x128xbf16>
    %cst_59 = arith.constant dense<0.000000e+00> : vector<8x128xf32>
    %160 = tpu.matmul %159, %20, %cst_59 {dimension_numbers = #tpu.dot_dimension_numbers<[1], [0], [0], [1], [0, 0, 1, 1], [], []>} : vector<8x128xbf16>, vector<128x128xbf16>, vector<8x128xf32> -> vector<8x128xf32>
    %161 = arith.addf %158, %160 : vector<8x128xf32>
    %162 = arith.negf %161 : vector<8x128xf32>
    %163 = math.exp %162 : vector<8x128xf32>
    %cst_60 = arith.constant 1.000000e+00 : f32
    %164 = vector.broadcast %cst_60 : f32 to vector<8x128xf32>
    %165 = arith.addf %164, %163 : vector<8x128xf32>
    %166 = arith.divf %164, %165 : vector<8x128xf32>
    %167 = arith.mulf %166, %5 : vector<8x128xf32>
    %168 = arith.addf %167, %10 : vector<8x128xf32>
    %c96_i32_61 = arith.constant 96 : i32
    %169 = tpu.dynamic_rotate %168 by %c96_i32_61 dim 1 : vector<8x128xf32>, i32 -> vector<8x128xf32>
    %c64_i32_62 = arith.constant 64 : i32
    %170 = tpu.dynamic_rotate %168 by %c64_i32_62 dim 1 : vector<8x128xf32>, i32 -> vector<8x128xf32>
    %c32_i32_63 = arith.constant 32 : i32
    %171 = tpu.dynamic_rotate %168 by %c32_i32_63 dim 1 : vector<8x128xf32>, i32 -> vector<8x128xf32>
    %172 = arith.mulf %169, %131 : vector<8x128xf32>
    %173 = arith.mulf %168, %171 : vector<8x128xf32>
    %174 = arith.addf %172, %173 : vector<8x128xf32>
    %175 = math.tanh %174 : vector<8x128xf32>
    %176 = arith.mulf %170, %175 : vector<8x128xf32>
    %cst_64 = arith.constant 0.000000e+00 : f32
    %177 = vector.broadcast %cst_64 : f32 to vector<8x128xf32>
    %178 = arith.select %12, %176, %177 : vector<8x128xi1>, vector<8x128xf32>
    %c32_i32_65 = arith.constant 32 : i32
    %179 = tpu.dynamic_rotate %157 by %c32_i32_65 dim 1 : vector<8x128xf32>, i32 -> vector<8x128xf32>
    %180 = arith.addf %178, %179 : vector<8x128xf32>
    %181 = arith.truncf %180 : vector<8x128xf32> to vector<8x128xbf16>
    %cst_66 = arith.constant dense<0.000000e+00> : vector<8x128xf32>
    %182 = tpu.matmul %181, %21, %cst_66 {dimension_numbers = #tpu.dot_dimension_numbers<[1], [0], [0], [1], [0, 0, 1, 1], [], []>} : vector<8x128xbf16>, vector<128x128xbf16>, vector<8x128xf32> -> vector<8x128xf32>
    %183 = arith.addf %182, %24 : vector<8x128xf32>
    %184 = arith.negf %183 : vector<8x128xf32>
    %185 = math.exp %184 : vector<8x128xf32>
    %cst_67 = arith.constant 1.000000e+00 : f32
    %186 = vector.broadcast %cst_67 : f32 to vector<8x128xf32>
    %187 = arith.addf %186, %185 : vector<8x128xf32>
    %188 = arith.divf %186, %187 : vector<8x128xf32>
    %189 = arith.mulf %188, %5 : vector<8x128xf32>
    %190 = arith.addf %189, %10 : vector<8x128xf32>
    %c96_i32_68 = arith.constant 96 : i32
    %191 = tpu.dynamic_rotate %190 by %c96_i32_68 dim 1 : vector<8x128xf32>, i32 -> vector<8x128xf32>
    %c64_i32_69 = arith.constant 64 : i32
    %192 = tpu.dynamic_rotate %190 by %c64_i32_69 dim 1 : vector<8x128xf32>, i32 -> vector<8x128xf32>
    %c32_i32_70 = arith.constant 32 : i32
    %193 = tpu.dynamic_rotate %190 by %c32_i32_70 dim 1 : vector<8x128xf32>, i32 -> vector<8x128xf32>
    %194 = arith.mulf %191, %153 : vector<8x128xf32>
    %195 = arith.mulf %190, %193 : vector<8x128xf32>
    %196 = arith.addf %194, %195 : vector<8x128xf32>
    %197 = math.tanh %196 : vector<8x128xf32>
    %198 = arith.mulf %192, %197 : vector<8x128xf32>
    %cst_71 = arith.constant 0.000000e+00 : f32
    %199 = vector.broadcast %cst_71 : f32 to vector<8x128xf32>
    %200 = arith.select %12, %198, %199 : vector<8x128xi1>, vector<8x128xf32>
    %201 = vector.extract_strided_slice %19 {offsets = [32, 0], sizes = [8, 128], strides = [1, 1]} : vector<64x128xf32> to vector<8x128xf32>
    %202 = arith.truncf %178 : vector<8x128xf32> to vector<8x128xbf16>
    %cst_72 = arith.constant dense<0.000000e+00> : vector<8x128xf32>
    %203 = tpu.matmul %202, %20, %cst_72 {dimension_numbers = #tpu.dot_dimension_numbers<[1], [0], [0], [1], [0, 0, 1, 1], [], []>} : vector<8x128xbf16>, vector<128x128xbf16>, vector<8x128xf32> -> vector<8x128xf32>
    %204 = arith.addf %201, %203 : vector<8x128xf32>
    %205 = arith.negf %204 : vector<8x128xf32>
    %206 = math.exp %205 : vector<8x128xf32>
    %cst_73 = arith.constant 1.000000e+00 : f32
    %207 = vector.broadcast %cst_73 : f32 to vector<8x128xf32>
    %208 = arith.addf %207, %206 : vector<8x128xf32>
    %209 = arith.divf %207, %208 : vector<8x128xf32>
    %210 = arith.mulf %209, %5 : vector<8x128xf32>
    %211 = arith.addf %210, %10 : vector<8x128xf32>
    %c96_i32_74 = arith.constant 96 : i32
    %212 = tpu.dynamic_rotate %211 by %c96_i32_74 dim 1 : vector<8x128xf32>, i32 -> vector<8x128xf32>
    %c64_i32_75 = arith.constant 64 : i32
    %213 = tpu.dynamic_rotate %211 by %c64_i32_75 dim 1 : vector<8x128xf32>, i32 -> vector<8x128xf32>
    %c32_i32_76 = arith.constant 32 : i32
    %214 = tpu.dynamic_rotate %211 by %c32_i32_76 dim 1 : vector<8x128xf32>, i32 -> vector<8x128xf32>
    %215 = arith.mulf %212, %174 : vector<8x128xf32>
    %216 = arith.mulf %211, %214 : vector<8x128xf32>
    %217 = arith.addf %215, %216 : vector<8x128xf32>
    %218 = math.tanh %217 : vector<8x128xf32>
    %219 = arith.mulf %213, %218 : vector<8x128xf32>
    %cst_77 = arith.constant 0.000000e+00 : f32
    %220 = vector.broadcast %cst_77 : f32 to vector<8x128xf32>
    %221 = arith.select %12, %219, %220 : vector<8x128xi1>, vector<8x128xf32>
    %c32_i32_78 = arith.constant 32 : i32
    %222 = tpu.dynamic_rotate %200 by %c32_i32_78 dim 1 : vector<8x128xf32>, i32 -> vector<8x128xf32>
    %223 = arith.addf %221, %222 : vector<8x128xf32>
    %224 = arith.truncf %223 : vector<8x128xf32> to vector<8x128xbf16>
    %cst_79 = arith.constant dense<0.000000e+00> : vector<8x128xf32>
    %225 = tpu.matmul %224, %21, %cst_79 {dimension_numbers = #tpu.dot_dimension_numbers<[1], [0], [0], [1], [0, 0, 1, 1], [], []>} : vector<8x128xbf16>, vector<128x128xbf16>, vector<8x128xf32> -> vector<8x128xf32>
    %226 = arith.addf %225, %24 : vector<8x128xf32>
    %227 = arith.negf %226 : vector<8x128xf32>
    %228 = math.exp %227 : vector<8x128xf32>
    %cst_80 = arith.constant 1.000000e+00 : f32
    %229 = vector.broadcast %cst_80 : f32 to vector<8x128xf32>
    %230 = arith.addf %229, %228 : vector<8x128xf32>
    %231 = arith.divf %229, %230 : vector<8x128xf32>
    %232 = arith.mulf %231, %5 : vector<8x128xf32>
    %233 = arith.addf %232, %10 : vector<8x128xf32>
    %c96_i32_81 = arith.constant 96 : i32
    %234 = tpu.dynamic_rotate %233 by %c96_i32_81 dim 1 : vector<8x128xf32>, i32 -> vector<8x128xf32>
    %c64_i32_82 = arith.constant 64 : i32
    %235 = tpu.dynamic_rotate %233 by %c64_i32_82 dim 1 : vector<8x128xf32>, i32 -> vector<8x128xf32>
    %c32_i32_83 = arith.constant 32 : i32
    %236 = tpu.dynamic_rotate %233 by %c32_i32_83 dim 1 : vector<8x128xf32>, i32 -> vector<8x128xf32>
    %237 = arith.mulf %234, %196 : vector<8x128xf32>
    %238 = arith.mulf %233, %236 : vector<8x128xf32>
    %239 = arith.addf %237, %238 : vector<8x128xf32>
    %240 = math.tanh %239 : vector<8x128xf32>
    %241 = arith.mulf %235, %240 : vector<8x128xf32>
    %cst_84 = arith.constant 0.000000e+00 : f32
    %242 = vector.broadcast %cst_84 : f32 to vector<8x128xf32>
    %243 = arith.select %12, %241, %242 : vector<8x128xi1>, vector<8x128xf32>
    %244 = vector.extract_strided_slice %19 {offsets = [40, 0], sizes = [8, 128], strides = [1, 1]} : vector<64x128xf32> to vector<8x128xf32>
    %245 = arith.truncf %221 : vector<8x128xf32> to vector<8x128xbf16>
    %cst_85 = arith.constant dense<0.000000e+00> : vector<8x128xf32>
    %246 = tpu.matmul %245, %20, %cst_85 {dimension_numbers = #tpu.dot_dimension_numbers<[1], [0], [0], [1], [0, 0, 1, 1], [], []>} : vector<8x128xbf16>, vector<128x128xbf16>, vector<8x128xf32> -> vector<8x128xf32>
    %247 = arith.addf %244, %246 : vector<8x128xf32>
    %248 = arith.negf %247 : vector<8x128xf32>
    %249 = math.exp %248 : vector<8x128xf32>
    %cst_86 = arith.constant 1.000000e+00 : f32
    %250 = vector.broadcast %cst_86 : f32 to vector<8x128xf32>
    %251 = arith.addf %250, %249 : vector<8x128xf32>
    %252 = arith.divf %250, %251 : vector<8x128xf32>
    %253 = arith.mulf %252, %5 : vector<8x128xf32>
    %254 = arith.addf %253, %10 : vector<8x128xf32>
    %c96_i32_87 = arith.constant 96 : i32
    %255 = tpu.dynamic_rotate %254 by %c96_i32_87 dim 1 : vector<8x128xf32>, i32 -> vector<8x128xf32>
    %c64_i32_88 = arith.constant 64 : i32
    %256 = tpu.dynamic_rotate %254 by %c64_i32_88 dim 1 : vector<8x128xf32>, i32 -> vector<8x128xf32>
    %c32_i32_89 = arith.constant 32 : i32
    %257 = tpu.dynamic_rotate %254 by %c32_i32_89 dim 1 : vector<8x128xf32>, i32 -> vector<8x128xf32>
    %258 = arith.mulf %255, %217 : vector<8x128xf32>
    %259 = arith.mulf %254, %257 : vector<8x128xf32>
    %260 = arith.addf %258, %259 : vector<8x128xf32>
    %261 = math.tanh %260 : vector<8x128xf32>
    %262 = arith.mulf %256, %261 : vector<8x128xf32>
    %cst_90 = arith.constant 0.000000e+00 : f32
    %263 = vector.broadcast %cst_90 : f32 to vector<8x128xf32>
    %264 = arith.select %12, %262, %263 : vector<8x128xi1>, vector<8x128xf32>
    %c32_i32_91 = arith.constant 32 : i32
    %265 = tpu.dynamic_rotate %243 by %c32_i32_91 dim 1 : vector<8x128xf32>, i32 -> vector<8x128xf32>
    %266 = arith.addf %264, %265 : vector<8x128xf32>
    %267 = arith.truncf %266 : vector<8x128xf32> to vector<8x128xbf16>
    %cst_92 = arith.constant dense<0.000000e+00> : vector<8x128xf32>
    %268 = tpu.matmul %267, %21, %cst_92 {dimension_numbers = #tpu.dot_dimension_numbers<[1], [0], [0], [1], [0, 0, 1, 1], [], []>} : vector<8x128xbf16>, vector<128x128xbf16>, vector<8x128xf32> -> vector<8x128xf32>
    %269 = arith.addf %268, %24 : vector<8x128xf32>
    %270 = arith.negf %269 : vector<8x128xf32>
    %271 = math.exp %270 : vector<8x128xf32>
    %cst_93 = arith.constant 1.000000e+00 : f32
    %272 = vector.broadcast %cst_93 : f32 to vector<8x128xf32>
    %273 = arith.addf %272, %271 : vector<8x128xf32>
    %274 = arith.divf %272, %273 : vector<8x128xf32>
    %275 = arith.mulf %274, %5 : vector<8x128xf32>
    %276 = arith.addf %275, %10 : vector<8x128xf32>
    %c96_i32_94 = arith.constant 96 : i32
    %277 = tpu.dynamic_rotate %276 by %c96_i32_94 dim 1 : vector<8x128xf32>, i32 -> vector<8x128xf32>
    %c64_i32_95 = arith.constant 64 : i32
    %278 = tpu.dynamic_rotate %276 by %c64_i32_95 dim 1 : vector<8x128xf32>, i32 -> vector<8x128xf32>
    %c32_i32_96 = arith.constant 32 : i32
    %279 = tpu.dynamic_rotate %276 by %c32_i32_96 dim 1 : vector<8x128xf32>, i32 -> vector<8x128xf32>
    %280 = arith.mulf %277, %239 : vector<8x128xf32>
    %281 = arith.mulf %276, %279 : vector<8x128xf32>
    %282 = arith.addf %280, %281 : vector<8x128xf32>
    %283 = math.tanh %282 : vector<8x128xf32>
    %284 = arith.mulf %278, %283 : vector<8x128xf32>
    %cst_97 = arith.constant 0.000000e+00 : f32
    %285 = vector.broadcast %cst_97 : f32 to vector<8x128xf32>
    %286 = arith.select %12, %284, %285 : vector<8x128xi1>, vector<8x128xf32>
    %287 = vector.extract_strided_slice %19 {offsets = [48, 0], sizes = [8, 128], strides = [1, 1]} : vector<64x128xf32> to vector<8x128xf32>
    %288 = arith.truncf %264 : vector<8x128xf32> to vector<8x128xbf16>
    %cst_98 = arith.constant dense<0.000000e+00> : vector<8x128xf32>
    %289 = tpu.matmul %288, %20, %cst_98 {dimension_numbers = #tpu.dot_dimension_numbers<[1], [0], [0], [1], [0, 0, 1, 1], [], []>} : vector<8x128xbf16>, vector<128x128xbf16>, vector<8x128xf32> -> vector<8x128xf32>
    %290 = arith.addf %287, %289 : vector<8x128xf32>
    %291 = arith.negf %290 : vector<8x128xf32>
    %292 = math.exp %291 : vector<8x128xf32>
    %cst_99 = arith.constant 1.000000e+00 : f32
    %293 = vector.broadcast %cst_99 : f32 to vector<8x128xf32>
    %294 = arith.addf %293, %292 : vector<8x128xf32>
    %295 = arith.divf %293, %294 : vector<8x128xf32>
    %296 = arith.mulf %295, %5 : vector<8x128xf32>
    %297 = arith.addf %296, %10 : vector<8x128xf32>
    %c96_i32_100 = arith.constant 96 : i32
    %298 = tpu.dynamic_rotate %297 by %c96_i32_100 dim 1 : vector<8x128xf32>, i32 -> vector<8x128xf32>
    %c64_i32_101 = arith.constant 64 : i32
    %299 = tpu.dynamic_rotate %297 by %c64_i32_101 dim 1 : vector<8x128xf32>, i32 -> vector<8x128xf32>
    %c32_i32_102 = arith.constant 32 : i32
    %300 = tpu.dynamic_rotate %297 by %c32_i32_102 dim 1 : vector<8x128xf32>, i32 -> vector<8x128xf32>
    %301 = arith.mulf %298, %260 : vector<8x128xf32>
    %302 = arith.mulf %297, %300 : vector<8x128xf32>
    %303 = arith.addf %301, %302 : vector<8x128xf32>
    %304 = math.tanh %303 : vector<8x128xf32>
    %305 = arith.mulf %299, %304 : vector<8x128xf32>
    %cst_103 = arith.constant 0.000000e+00 : f32
    %306 = vector.broadcast %cst_103 : f32 to vector<8x128xf32>
    %307 = arith.select %12, %305, %306 : vector<8x128xi1>, vector<8x128xf32>
    %c32_i32_104 = arith.constant 32 : i32
    %308 = tpu.dynamic_rotate %286 by %c32_i32_104 dim 1 : vector<8x128xf32>, i32 -> vector<8x128xf32>
    %309 = arith.addf %307, %308 : vector<8x128xf32>
    %310 = arith.truncf %309 : vector<8x128xf32> to vector<8x128xbf16>
    %cst_105 = arith.constant dense<0.000000e+00> : vector<8x128xf32>
    %311 = tpu.matmul %310, %21, %cst_105 {dimension_numbers = #tpu.dot_dimension_numbers<[1], [0], [0], [1], [0, 0, 1, 1], [], []>} : vector<8x128xbf16>, vector<128x128xbf16>, vector<8x128xf32> -> vector<8x128xf32>
    %312 = arith.addf %311, %24 : vector<8x128xf32>
    %313 = arith.negf %312 : vector<8x128xf32>
    %314 = math.exp %313 : vector<8x128xf32>
    %cst_106 = arith.constant 1.000000e+00 : f32
    %315 = vector.broadcast %cst_106 : f32 to vector<8x128xf32>
    %316 = arith.addf %315, %314 : vector<8x128xf32>
    %317 = arith.divf %315, %316 : vector<8x128xf32>
    %318 = arith.mulf %317, %5 : vector<8x128xf32>
    %319 = arith.addf %318, %10 : vector<8x128xf32>
    %c96_i32_107 = arith.constant 96 : i32
    %320 = tpu.dynamic_rotate %319 by %c96_i32_107 dim 1 : vector<8x128xf32>, i32 -> vector<8x128xf32>
    %c64_i32_108 = arith.constant 64 : i32
    %321 = tpu.dynamic_rotate %319 by %c64_i32_108 dim 1 : vector<8x128xf32>, i32 -> vector<8x128xf32>
    %c32_i32_109 = arith.constant 32 : i32
    %322 = tpu.dynamic_rotate %319 by %c32_i32_109 dim 1 : vector<8x128xf32>, i32 -> vector<8x128xf32>
    %323 = arith.mulf %320, %282 : vector<8x128xf32>
    %324 = arith.mulf %319, %322 : vector<8x128xf32>
    %325 = arith.addf %323, %324 : vector<8x128xf32>
    %326 = math.tanh %325 : vector<8x128xf32>
    %327 = arith.mulf %321, %326 : vector<8x128xf32>
    %cst_110 = arith.constant 0.000000e+00 : f32
    %328 = vector.broadcast %cst_110 : f32 to vector<8x128xf32>
    %329 = arith.select %12, %327, %328 : vector<8x128xi1>, vector<8x128xf32>
    %330 = vector.extract_strided_slice %19 {offsets = [56, 0], sizes = [8, 128], strides = [1, 1]} : vector<64x128xf32> to vector<8x128xf32>
    %331 = arith.truncf %307 : vector<8x128xf32> to vector<8x128xbf16>
    %cst_111 = arith.constant dense<0.000000e+00> : vector<8x128xf32>
    %332 = tpu.matmul %331, %20, %cst_111 {dimension_numbers = #tpu.dot_dimension_numbers<[1], [0], [0], [1], [0, 0, 1, 1], [], []>} : vector<8x128xbf16>, vector<128x128xbf16>, vector<8x128xf32> -> vector<8x128xf32>
    %333 = arith.addf %330, %332 : vector<8x128xf32>
    %334 = arith.negf %333 : vector<8x128xf32>
    %335 = math.exp %334 : vector<8x128xf32>
    %cst_112 = arith.constant 1.000000e+00 : f32
    %336 = vector.broadcast %cst_112 : f32 to vector<8x128xf32>
    %337 = arith.addf %336, %335 : vector<8x128xf32>
    %338 = arith.divf %336, %337 : vector<8x128xf32>
    %339 = arith.mulf %338, %5 : vector<8x128xf32>
    %340 = arith.addf %339, %10 : vector<8x128xf32>
    %c96_i32_113 = arith.constant 96 : i32
    %341 = tpu.dynamic_rotate %340 by %c96_i32_113 dim 1 : vector<8x128xf32>, i32 -> vector<8x128xf32>
    %c64_i32_114 = arith.constant 64 : i32
    %342 = tpu.dynamic_rotate %340 by %c64_i32_114 dim 1 : vector<8x128xf32>, i32 -> vector<8x128xf32>
    %c32_i32_115 = arith.constant 32 : i32
    %343 = tpu.dynamic_rotate %340 by %c32_i32_115 dim 1 : vector<8x128xf32>, i32 -> vector<8x128xf32>
    %344 = arith.mulf %341, %303 : vector<8x128xf32>
    %345 = arith.mulf %340, %343 : vector<8x128xf32>
    %346 = arith.addf %344, %345 : vector<8x128xf32>
    %347 = math.tanh %346 : vector<8x128xf32>
    %348 = arith.mulf %342, %347 : vector<8x128xf32>
    %cst_116 = arith.constant 0.000000e+00 : f32
    %349 = vector.broadcast %cst_116 : f32 to vector<8x128xf32>
    %350 = arith.select %12, %348, %349 : vector<8x128xi1>, vector<8x128xf32>
    %c32_i32_117 = arith.constant 32 : i32
    %351 = tpu.dynamic_rotate %329 by %c32_i32_117 dim 1 : vector<8x128xf32>, i32 -> vector<8x128xf32>
    %352 = arith.addf %350, %351 : vector<8x128xf32>
    %353 = arith.truncf %352 : vector<8x128xf32> to vector<8x128xbf16>
    %cst_118 = arith.constant dense<0.000000e+00> : vector<8x128xf32>
    %354 = tpu.matmul %353, %21, %cst_118 {dimension_numbers = #tpu.dot_dimension_numbers<[1], [0], [0], [1], [0, 0, 1, 1], [], []>} : vector<8x128xbf16>, vector<128x128xbf16>, vector<8x128xf32> -> vector<8x128xf32>
    %355 = arith.addf %354, %24 : vector<8x128xf32>
    %356 = arith.negf %355 : vector<8x128xf32>
    %357 = math.exp %356 : vector<8x128xf32>
    %cst_119 = arith.constant 1.000000e+00 : f32
    %358 = vector.broadcast %cst_119 : f32 to vector<8x128xf32>
    %359 = arith.addf %358, %357 : vector<8x128xf32>
    %360 = arith.divf %358, %359 : vector<8x128xf32>
    %361 = arith.mulf %360, %5 : vector<8x128xf32>
    %362 = arith.addf %361, %10 : vector<8x128xf32>
    %c96_i32_120 = arith.constant 96 : i32
    %363 = tpu.dynamic_rotate %362 by %c96_i32_120 dim 1 : vector<8x128xf32>, i32 -> vector<8x128xf32>
    %c64_i32_121 = arith.constant 64 : i32
    %364 = tpu.dynamic_rotate %362 by %c64_i32_121 dim 1 : vector<8x128xf32>, i32 -> vector<8x128xf32>
    %c32_i32_122 = arith.constant 32 : i32
    %365 = tpu.dynamic_rotate %362 by %c32_i32_122 dim 1 : vector<8x128xf32>, i32 -> vector<8x128xf32>
    %366 = arith.mulf %363, %325 : vector<8x128xf32>
    %367 = arith.mulf %362, %365 : vector<8x128xf32>
    %368 = arith.addf %366, %367 : vector<8x128xf32>
    %369 = math.tanh %368 : vector<8x128xf32>
    %370 = arith.mulf %364, %369 : vector<8x128xf32>
    %cst_123 = arith.constant 0.000000e+00 : f32
    %371 = vector.broadcast %cst_123 : f32 to vector<8x128xf32>
    %372 = arith.select %12, %370, %371 : vector<8x128xi1>, vector<8x128xf32>
    %c0_124 = arith.constant 0 : index
    %c0_125 = arith.constant 0 : index
    %373 = vector.load %arg7[%c0_124, %c0_125] : memref<128x1024xf32, #tpu.memory_space<vmem>>, vector<128x1024xf32>
    %cst_126 = arith.constant dense<0.000000e+00> : vector<8x1024xf32>
    %374 = tpu.matmul %372, %373, %cst_126 {dimension_numbers = #tpu.dot_dimension_numbers<[1], [0], [0], [1], [0, 0, 1, 1], [], []>} : vector<8x128xf32>, vector<128x1024xf32>, vector<8x1024xf32> -> vector<8x1024xf32>
    %c0_127 = arith.constant 0 : index
    %c0_128 = arith.constant 0 : index
    %375 = vector.load %arg8[%c0_127, %c0_128] : memref<1x1024xf32, #tpu.memory_space<vmem>>, vector<1x1024xf32>
    %376 = vector.broadcast %375 : vector<1x1024xf32> to vector<8x1024xf32>
    %377 = arith.addf %374, %376 : vector<8x1024xf32>
    %cst_129 = arith.constant 0.000000e+00 : f32
    %378 = vector.broadcast %cst_129 : f32 to vector<8x1024xf32>
    %379 = arith.maximumf %377, %378 : vector<8x1024xf32>
    %c0_130 = arith.constant 0 : index
    %c0_131 = arith.constant 0 : index
    %380 = vector.load %arg9[%c0_130, %c0_131] : memref<1x1024xf32, #tpu.memory_space<vmem>>, vector<1x1024xf32>
    %381 = vector.broadcast %380 : vector<1x1024xf32> to vector<8x1024xf32>
    %382 = arith.mulf %379, %381 : vector<8x1024xf32>
    %cst_132 = arith.constant dense<0.000000e+00> : vector<8xf32>
    %383 = vector.multi_reduction <add>, %382, %cst_132 [1] : vector<8x1024xf32> to vector<8xf32>
    %384 = vector.shape_cast %383 : vector<8xf32> to vector<8x1xf32>
    %c0_133 = arith.constant 0 : index
    %c0_134 = arith.constant 0 : index
    %385 = vector.load %arg10[%c0_133, %c0_134] : memref<1x1xf32, #tpu.memory_space<vmem>>, vector<1x1xf32>
    %386 = vector.broadcast %385 : vector<1x1xf32> to vector<8x1xf32>
    %387 = arith.addf %384, %386 : vector<8x1xf32>
    %c0_135 = arith.constant 0 : index
    %c0_136 = arith.constant 0 : index
    %c0_137 = arith.constant 0 : index
    %388 = vector.load %arg11[%c0_135, %c0_136, %c0_137] : memref<1x8x1xf32, #tpu.memory_space<vmem>>, vector<1x8x1xf32>
    %389 = vector.shape_cast %388 : vector<1x8x1xf32> to vector<8x1xf32>
    %390 = vector.shape_cast %387 : vector<8x1xf32> to vector<1x8x1xf32>
    tpu.vector_store %arg11[%c0_135, %c0_136, %c0_137], %390 {strides = array<i32>} : memref<1x8x1xf32, #tpu.memory_space<vmem>>, vector<1x8x1xf32>,
    return
  }
  func.func @transform_0(%arg0: i32) -> (i32, i32, i32) {
    %c0_i32 = arith.constant 0 : i32
    %c0_i32_0 = arith.constant 0 : i32
    %c0_i32_1 = arith.constant 0 : i32
    return %arg0, %c0_i32, %c0_i32_0 : i32, i32, i32
  }
  func.func @transform_1(%arg0: i32) -> (i32, i32) {
    %c0_i32 = arith.constant 0 : i32
    %c0_i32_0 = arith.constant 0 : i32
    %c0_i32_1 = arith.constant 0 : i32
    return %c0_i32, %c0_i32_0 : i32, i32
  }
  func.func @transform_2(%arg0: i32) -> (i32, i32) {
    %c0_i32 = arith.constant 0 : i32
    %c0_i32_0 = arith.constant 0 : i32
    %c0_i32_1 = arith.constant 0 : i32
    return %c0_i32, %c0_i32_0 : i32, i32
  }
  func.func @transform_3(%arg0: i32) -> (i32, i32) {
    %c0_i32 = arith.constant 0 : i32
    %c0_i32_0 = arith.constant 0 : i32
    %c0_i32_1 = arith.constant 0 : i32
    return %c0_i32, %c0_i32_0 : i32, i32
  }
  func.func @transform_4(%arg0: i32) -> (i32, i32) {
    %c0_i32 = arith.constant 0 : i32
    %c0_i32_0 = arith.constant 0 : i32
    %c0_i32_1 = arith.constant 0 : i32
    return %c0_i32, %c0_i32_0 : i32, i32
  }
  func.func @transform_5(%arg0: i32) -> (i32, i32) {
    %c0_i32 = arith.constant 0 : i32
    %c0_i32_0 = arith.constant 0 : i32
    %c0_i32_1 = arith.constant 0 : i32
    return %c0_i32, %c0_i32_0 : i32, i32
  }
  func.func @transform_6(%arg0: i32) -> (i32, i32) {
    %c0_i32 = arith.constant 0 : i32
    %c0_i32_0 = arith.constant 0 : i32
    %c0_i32_1 = arith.constant 0 : i32
    return %c0_i32, %c0_i32_0 : i32, i32
  }
  func.func @transform_7(%arg0: i32) -> (i32, i32) {
    %c0_i32 = arith.constant 0 : i32
    %c0_i32_0 = arith.constant 0 : i32
    %c0_i32_1 = arith.constant 0 : i32
    return %c0_i32, %c0_i32_0 : i32, i32
  }
  func.func @transform_8(%arg0: i32) -> (i32, i32) {
    %c0_i32 = arith.constant 0 : i32
    %c0_i32_0 = arith.constant 0 : i32
    %c0_i32_1 = arith.constant 0 : i32
    return %c0_i32, %c0_i32_0 : i32, i32
  }
  func.func @transform_9(%arg0: i32) -> (i32, i32) {
    %c0_i32 = arith.constant 0 : i32
    %c0_i32_0 = arith.constant 0 : i32
    %c0_i32_1 = arith.constant 0 : i32
    return %c0_i32, %c0_i32_0 : i32, i32
  }
  func.func @transform_10(%arg0: i32) -> (i32, i32, i32) {
    %c0_i32 = arith.constant 0 : i32
    %c0_i32_0 = arith.constant 0 : i32
    %c0_i32_1 = arith.constant 0 : i32
    return %arg0, %c0_i32, %c0_i32_0 : i32, i32, i32
  }
}

</mosaic_0001>

<llo_original>
// kernel: lstm_linear_forward.1
$region0: #{lstm_linear_forward.1}
  #allocation0 [shape = 'u32[]', space=smem, size = 0x4, offset = 0x4, fixed_abs, tag = 'smem constant byte address 0x4 - core index']
  #allocation1 [shape = 'u32[72,128]{1,0:T(1,128)}', space=vmem, size = 0x9000, scoped, tag = 'internal scratch']
  #allocation2 [shape = 'f32[1,1]{1,0:T(1,128)S(1)}', space=vmem, size = 0x200, scoped, tag = 'scoped memory for lstm_linear_forward.1']
  %s0 = inlined_call_operand.vmem [shape: f32[1,64,8], index: 0, kind: input, shape index: {}]
  %s1 = inlined_call_operand.vmem [shape: f32[8,128], index: 1, kind: input, shape index: {}]
  %s2 = inlined_call_operand.vmem [shape: f32[1,128], index: 2, kind: input, shape index: {}]
  %s3 = inlined_call_operand.vmem [shape: bf16[128,128], index: 3, kind: input, shape index: {}]
  %s4 = inlined_call_operand.vmem [shape: bf16[128,128], index: 4, kind: input, shape index: {}]
  %s5 = inlined_call_operand.vmem [shape: f32[1,128], index: 5, kind: input, shape index: {}]
  %s6 = inlined_call_operand.hbm [shape: f32[128,1024], index: 6, kind: input, shape index: {}]
  %s7 = inlined_call_operand.vmem [shape: f32[1,1024], index: 7, kind: input, shape index: {}]
  %s8 = inlined_call_operand.vmem [shape: f32[1,1024], index: 8, kind: input, shape index: {}]
  %s9 = inlined_call_operand.<no memory space> [shape: f32[1,1], index: 9, kind: input, shape index: {}]
  %s10 = inlined_call_operand.vmem [shape: f32[1,8,1], index: 10, kind: output, shape index: {}]
  %s11 = sld [smem:[#allocation0]]
  $region54: #{lstm_linear_forward.1} parent=0
    _
  %s13 = ssub.s32 1, %s11
  %s14 = scalar_select 0, %s13, %s11
  %v15 = vstv %s9
  %16 = vst [vmem:[#allocation2] sm:$0x1] %v15
  $region1: #{lstm_linear_forward.1} parent=0
    #allocation3 [shape = 'u8[524288]{0}', space=vmem, size = 0x80000, scoped, tag = 'input window, operand 6, single buffered']
    #allocation4 [shape = 's32[1]{0}', space=sflag, size = 0x4, scoped, tag = 'scoped memory for lstm_linear_forward.1']
    %17 = vsyncpa [#allocation4], 0
    // Predicated region
    $region2: #{lstm_linear_forward.1} parent=1 // pred_check
      _
    $region3: #{lstm_linear_forward.1} parent=1 // pred_check_branch
      %19 = sbr.rel (0) target = $region5
    $region4: #{lstm_linear_forward.1} parent=1 // pred_region
      _
    $region5: #{lstm_linear_forward.1} parent=1 // pred_fallthru
      _
    // Predicated region
    $region6: #{lstm_linear_forward.1} parent=1 // pred_check
      _
    $region7: #{lstm_linear_forward.1} parent=1 // pred_check_branch
      %21 = sbr.rel (0) target = $region9
    $region8: #{lstm_linear_forward.1} parent=1 // pred_region
      _
    $region9: #{lstm_linear_forward.1} parent=1 // pred_fallthru
      _
    // Predicated region
    $region10: #{lstm_linear_forward.1} parent=1 // pred_check
      _
    $region11: #{lstm_linear_forward.1} parent=1 // pred_check_branch
      %23 = sbr.rel (0) target = $region13
    $region12: #{lstm_linear_forward.1} parent=1 // pred_region
      _
    $region13: #{lstm_linear_forward.1} parent=1 // pred_fallthru
      _
    // Predicated region
    $region14: #{lstm_linear_forward.1} parent=1 // pred_check
      _
    $region15: #{lstm_linear_forward.1} parent=1 // pred_check_branch
      %25 = sbr.rel (0) target = $region17
    $region16: #{lstm_linear_forward.1} parent=1 // pred_region
      _
    $region17: #{lstm_linear_forward.1} parent=1 // pred_fallthru
      _
    // Predicated region
    $region18: #{lstm_linear_forward.1} parent=1 // pred_check
      _
    $region19: #{lstm_linear_forward.1} parent=1 // pred_check_branch
      %27 = sbr.rel (0) target = $region21
    $region20: #{lstm_linear_forward.1} parent=1 // pred_region
      _
    $region21: #{lstm_linear_forward.1} parent=1 // pred_fallthru
      _
    // Predicated region
    $region22: #{lstm_linear_forward.1} parent=1 // pred_check
      _
    $region23: #{lstm_linear_forward.1} parent=1 // pred_check_branch
      %29 = sbr.rel (0) target = $region25
    $region24: #{lstm_linear_forward.1} parent=1 // pred_region
      _
    $region25: #{lstm_linear_forward.1} parent=1 // pred_fallthru
      _
    // Predicated region
    $region26: #{lstm_linear_forward.1} parent=1 // pred_check
      _
    $region27: #{lstm_linear_forward.1} parent=1 // pred_check_branch
      %31 = sbr.rel (0) target = $region29
    $region28: #{lstm_linear_forward.1} parent=1 // pred_region
      %33 = vsyncadd [#allocation4], 0
      %s34 = sshll.u32 %s6, 4
      %s35 = int_to_ptr.hbm [resolvable:$true] %s34
      %s36 = sshll.u32 [#allocation3], 4
      %s37 = int_to_ptr.vmem [resolvable:$true] %s36
      %42 = dma.hbm_to_vmem [thread:$0]  %s35, 16384, %s37, [#allocation4], 1024, 1024, 64
    $region29: #{lstm_linear_forward.1} parent=1 // pred_fallthru
      _
    // Predicated region
    $region30: #{lstm_linear_forward.1} parent=1 // pred_check
      _
    $region31: #{lstm_linear_forward.1} parent=1 // pred_check_branch
      %44 = sbr.rel (0) target = $region33
    $region32: #{lstm_linear_forward.1} parent=1 // pred_region
      _
    $region33: #{lstm_linear_forward.1} parent=1 // pred_fallthru
      _
    // Predicated region
    $region34: #{lstm_linear_forward.1} parent=1 // pred_check
      _
    $region35: #{lstm_linear_forward.1} parent=1 // pred_check_branch
      %46 = sbr.rel (0) target = $region37
    $region36: #{lstm_linear_forward.1} parent=1 // pred_region
      _
    $region37: #{lstm_linear_forward.1} parent=1 // pred_fallthru
      _
    // Predicated region
    $region38: #{lstm_linear_forward.1} parent=1 // pred_check
      _
    $region39: #{lstm_linear_forward.1} parent=1 // pred_check_branch
      %48 = sbr.rel (0) target = $region41
    $region40: #{lstm_linear_forward.1} parent=1 // pred_region
      _
    $region41: #{lstm_linear_forward.1} parent=1 // pred_fallthru
      _
    // Predicated region
    $region42: #{lstm_linear_forward.1} parent=1 // pred_check
      _
    $region43: #{lstm_linear_forward.1} parent=1 // pred_check_branch
      %50 = sbr.rel (0) target = $region45
    $region44: #{lstm_linear_forward.1} parent=1 // pred_region
      %52 = dma.done [#allocation4], 16384
    $region45: #{lstm_linear_forward.1} parent=1 // pred_fallthru
      _
    %v54 = vlaneseq
    %v55 = vand.u32 %v54, 127
    %vm56 = vcmp.ge.s32.totalorder %v55, 96
    %v57 = vsel %vm56, 2.0, 1.0
    %v58 = vsel %vm56, -1.0, 0.0
    %vm59 = vcmp.lt.s32.totalorder %v55, 32
    %v60 = vld [vmem:[%s0] sm:$0xff]
    %v61 = vld [vmem:[%s0 + $0x8] sm:$0xff]
    %v62 = vld [vmem:[%s0 + $0x10] sm:$0xff]
    %v63 = vld [vmem:[%s0 + $0x18] sm:$0xff]
    %v64 = vld [vmem:[%s0 + $0x20] sm:$0xff]
    %v65 = vld [vmem:[%s0 + $0x28] sm:$0xff]
    %v66 = vld [vmem:[%s0 + $0x30] sm:$0xff]
    %v67 = vld [vmem:[%s0 + $0x38] sm:$0xff]
    %v68 = vld [vmem:[%s1] sm:$0xff]
    %v69 = vld [vmem:[%s2] sm:$0x1]
    %v71 = vperm.slane %v69, 0
    %vm73 = vcmask 64512
    %v75 = vsel %vm73, %v60, 0
    %v78 = vsel %vm73, %v61, 0
    %v81 = vsel %vm73, %v62, 0
    %v84 = vsel %vm73, %v63, 0
    %v87 = vsel %vm73, %v64, 0
    %v90 = vsel %vm73, %v65, 0
    %v93 = vsel %vm73, %v66, 0
    %v96 = vsel %vm73, %v67, 0
    %98 = vmatpush.msra.mxu0 0.0
    %99 = vmatpush.msra.mxu0 0.0
    %100 = vmatpush.msra.mxu0 0.0
    %101 = vmatpush.msra.mxu0 0.0
    %102 = vmatpush.msra.mxu0 0.0
    %103 = vmatpush.msra.mxu0 0.0
    %104 = vmatpush.msra.mxu0 0.0
    %105 = vmatpush.msra.mxu0 0.0
    %106 = vmatpush.msra.mxu0 0.0
    %107 = vmatpush.msra.mxu0 0.0
    %108 = vmatpush.msra.mxu0 0.0
    %109 = vmatpush.msra.mxu0 0.0
    %110 = vmatpush.msra.mxu0 0.0
    %111 = vmatpush.msra.mxu0 0.0
    %112 = vmatpush.msra.mxu0 0.0
    %113 = vmatpush.msra.mxu0 %v68
    %114 = vmatmul.f32.gmra.mxu0 %v75
    %v115 = vpop.f32.mrf.mxu0
    %v116 = vadd.f32 %v71, %v115
    %117 = vmatmul.f32.gmra.mxu0 %v78
    %v118 = vpop.f32.mrf.mxu0
    %v119 = vadd.f32 %v71, %v118
    %120 = vmatmul.f32.gmra.mxu0 %v81
    %v121 = vpop.f32.mrf.mxu0
    %v122 = vadd.f32 %v71, %v121
    %123 = vmatmul.f32.gmra.mxu0 %v84
    %v124 = vpop.f32.mrf.mxu0
    %v125 = vadd.f32 %v71, %v124
    %126 = vmatmul.f32.gmra.mxu0 %v87
    %v127 = vpop.f32.mrf.mxu0
    %v128 = vadd.f32 %v71, %v127
    %129 = vmatmul.f32.gmra.mxu0 %v90
    %v130 = vpop.f32.mrf.mxu0
    %v131 = vadd.f32 %v71, %v130
    %132 = vmatmul.f32.gmra.mxu0 %v93
    %v133 = vpop.f32.mrf.mxu0
    %v134 = vadd.f32 %v71, %v133
    %135 = vmatmul.f32.gmra.mxu0 %v96
    %v136 = vpop.f32.mrf.mxu0
    %v137 = vadd.f32 %v71, %v136
    %138 = vdwg.mxu0
    %v139 = vld [vmem:[%s3] sm:$0xf]
    %v140 = vld [vmem:[%s3 + $0x4] sm:$0xf]
    %v141 = vld [vmem:[%s3 + $0x8] sm:$0xf]
    %v142 = vld [vmem:[%s3 + $0xc] sm:$0xf]
    %v143 = vld [vmem:[%s3 + $0x10] sm:$0xf]
    %v144 = vld [vmem:[%s3 + $0x14] sm:$0xf]
    %v145 = vld [vmem:[%s3 + $0x18] sm:$0xf]
    %v146 = vld [vmem:[%s3 + $0x1c] sm:$0xf]
    %v147 = vld [vmem:[%s3 + $0x20] sm:$0xf]
    %v148 = vld [vmem:[%s3 + $0x24] sm:$0xf]
    %v149 = vld [vmem:[%s3 + $0x28] sm:$0xf]
    %v150 = vld [vmem:[%s3 + $0x2c] sm:$0xf]
    %v151 = vld [vmem:[%s3 + $0x30] sm:$0xf]
    %v152 = vld [vmem:[%s3 + $0x34] sm:$0xf]
    %v153 = vld [vmem:[%s3 + $0x38] sm:$0xf]
    %v154 = vld [vmem:[%s3 + $0x3c] sm:$0xf]
    %v155 = vld [vmem:[%s4] sm:$0xf]
    %v156 = vld [vmem:[%s4 + $0x4] sm:$0xf]
    %v157 = vld [vmem:[%s4 + $0x8] sm:$0xf]
    %v158 = vld [vmem:[%s4 + $0xc] sm:$0xf]
    %v159 = vld [vmem:[%s4 + $0x10] sm:$0xf]
    %v160 = vld [vmem:[%s4 + $0x14] sm:$0xf]
    %v161 = vld [vmem:[%s4 + $0x18] sm:$0xf]
    %v162 = vld [vmem:[%s4 + $0x1c] sm:$0xf]
    %v163 = vld [vmem:[%s4 + $0x20] sm:$0xf]
    %v164 = vld [vmem:[%s4 + $0x24] sm:$0xf]
    %v165 = vld [vmem:[%s4 + $0x28] sm:$0xf]
    %v166 = vld [vmem:[%s4 + $0x2c] sm:$0xf]
    %v167 = vld [vmem:[%s4 + $0x30] sm:$0xf]
    %v168 = vld [vmem:[%s4 + $0x34] sm:$0xf]
    %v169 = vld [vmem:[%s4 + $0x38] sm:$0xf]
    %v170 = vld [vmem:[%s4 + $0x3c] sm:$0xf]
    %v171 = vld [vmem:[%s5] sm:$0x1]
    %v173 = vperm.slane %v171, 0
    %v191 = vunpack.c.l.b16 %v139
    %v192 = vunpack.c.l.b16 %v140
    %v193 = vunpack.c.l.b16 %v141
    %v194 = vunpack.c.l.b16 %v142
    %v195 = vunpack.c.l.b16 %v143
    %v196 = vunpack.c.l.b16 %v144
    %v197 = vunpack.c.l.b16 %v145
    %v198 = vunpack.c.l.b16 %v146
    %v199 = vunpack.c.l.b16 %v147
    %v200 = vunpack.c.l.b16 %v148
    %v201 = vunpack.c.l.b16 %v149
    %v202 = vunpack.c.l.b16 %v150
    %v203 = vunpack.c.l.b16 %v151
    %v204 = vunpack.c.l.b16 %v152
    %v205 = vunpack.c.l.b16 %v153
    %v206 = vunpack.c.l.b16 %v154
    %v207 = vpack.c.b16 %v192, %v191
    %v208 = vpack.c.b16 %v194, %v193
    %v209 = vpack.c.b16 %v196, %v195
    %v210 = vpack.c.b16 %v198, %v197
    %v211 = vpack.c.b16 %v200, %v199
    %v212 = vpack.c.b16 %v202, %v201
    %v213 = vpack.c.b16 %v204, %v203
    %v214 = vpack.c.b16 %v206, %v205
    %223 = vmatpush.bf16.msra.mxu0 %v214
    %224 = vmatpush.bf16.msra.mxu0 %v213
    %225 = vmatpush.bf16.msra.mxu0 %v212
    %226 = vmatpush.bf16.msra.mxu0 %v211
    %227 = vmatpush.bf16.msra.mxu0 %v210
    %228 = vmatpush.bf16.msra.mxu0 %v209
    %229 = vmatpush.bf16.msra.mxu0 %v208
    %230 = vmatpush.bf16.msra.mxu0 %v207
    %231 = vmatmul.bf16.gmra.mxu0 0
    %v232 = vpop.f32.mrf.mxu0
    %v233 = vadd.f32 0.0, %v232
    %v234 = vpop.f32.mrf.mxu0
    %235 = vdwg.mxu0
    %v236 = vadd.f32 %v116, %v233
    %v237 = vxor.u32 %v236, 2147483648
    %v238 = vmul.f32 %v237, 1.442695
    %v239 = vpow.pop %v238
    %v240 = vadd.f32 %v239, 1.0
    %v241 = vrcp.pop %v240
    %v242 = vmul.f32 %v240, %v241
    %v243 = vsub.f32 1.0, %v242
    %v244 = vmul.f32 %v241, %v243
    %v245 = vadd.f32 %v241, %v244
    %vm246 = vweird.f32 %v240
    %vm247 = vweird.f32 %v241
    %vm248 = vmor %vm246, %vm247
    %v249 = vsel %vm248, %v241, %v245
    %v250 = vand.u32 2147483647, %v240
    %vm251 = vcmp.eq.f32.partialorder %v250, 8.507059e+37
    %v252 = vand.u32 %v240, 2147483648
    %v253 = vor.u32 1.1754944e-38, %v252
    %v254 = vsel %vm251, %v253, %v249
    %v255 = vmul.f32 1.0, %v254
    %v256 = vmul.f32 %v255, %v57
    %v257 = vadd.f32 %v256, %v58
    %258 = vrot.lane.b32.xlu0 %v257, 96
    %v259 = vpop.permute.xlu0 %258
    %260 = vrot.lane.b32.xlu0 %v257, 64
    %v261 = vpop.permute.xlu0 %260
    %262 = vrot.lane.b32.xlu0 %v257, 32
    %v263 = vpop.permute.xlu0 %262
    %v264 = vmul.f32 %v259, 0.0
    %v265 = vmul.f32 %v257, %v263
    %v266 = vadd.f32 %v264, %v265
    %v267 = vtanh.pop %v266
    %v268 = vmul.f32 %v261, %v267
    %v269 = vsel %vm59, %v268, 0.0
    %270 = vrot.lane.b32.xlu0 0.0, 32
    %v271 = vpop.permute.xlu0 %270
    %v272 = vadd.f32 %v269, %v271
    %v273 = vpack.c.bf16 %v272, %v272
    %v290 = vunpack.c.l.b16 %v155
    %v291 = vunpack.c.l.b16 %v156
    %v292 = vunpack.c.l.b16 %v157
    %v293 = vunpack.c.l.b16 %v158
    %v294 = vunpack.c.l.b16 %v159
    %v295 = vunpack.c.l.b16 %v160
    %v296 = vunpack.c.l.b16 %v161
    %v297 = vunpack.c.l.b16 %v162
    %v298 = vunpack.c.l.b16 %v163
    %v299 = vunpack.c.l.b16 %v164
    %v300 = vunpack.c.l.b16 %v165
    %v301 = vunpack.c.l.b16 %v166
    %v302 = vunpack.c.l.b16 %v167
    %v303 = vunpack.c.l.b16 %v168
    %v304 = vunpack.c.l.b16 %v169
    %v305 = vunpack.c.l.b16 %v170
    %v306 = vpack.c.b16 %v291, %v290
    %v307 = vpack.c.b16 %v293, %v292
    %v308 = vpack.c.b16 %v295, %v294
    %v309 = vpack.c.b16 %v297, %v296
    %v310 = vpack.c.b16 %v299, %v298
    %v311 = vpack.c.b16 %v301, %v300
    %v312 = vpack.c.b16 %v303, %v302
    %v313 = vpack.c.b16 %v305, %v304
    %322 = vmatpush.bf16.msra.mxu0 %v313
    %323 = vmatpush.bf16.msra.mxu0 %v312
    %324 = vmatpush.bf16.msra.mxu0 %v311
    %325 = vmatpush.bf16.msra.mxu0 %v310
    %326 = vmatpush.bf16.msra.mxu0 %v309
    %327 = vmatpush.bf16.msra.mxu0 %v308
    %328 = vmatpush.bf16.msra.mxu0 %v307
    %329 = vmatpush.bf16.msra.mxu0 %v306
    %330 = vmatmul.bf16.gmra.mxu0 %v273
    %v331 = vpop.f32.mrf.mxu0
    %v332 = vadd.f32 %v173, %v331
    %v333 = vpop.f32.mrf.mxu0
    %334 = vdwg.mxu0
    %v335 = vxor.u32 %v332, 2147483648
    %v336 = vmul.f32 %v335, 1.442695
    %v337 = vpow.pop %v336
    %v338 = vadd.f32 %v337, 1.0
    %v339 = vrcp.pop %v338
    %v340 = vmul.f32 %v338, %v339
    %v341 = vsub.f32 1.0, %v340
    %v342 = vmul.f32 %v339, %v341
    %v343 = vadd.f32 %v339, %v342
    %vm344 = vweird.f32 %v338
    %vm345 = vweird.f32 %v339
    %vm346 = vmor %vm344, %vm345
    %v347 = vsel %vm346, %v339, %v343
    %v348 = vand.u32 2147483647, %v338
    %vm349 = vcmp.eq.f32.partialorder %v348, 8.507059e+37
    %v350 = vand.u32 %v338, 2147483648
    %v351 = vor.u32 1.1754944e-38, %v350
    %v352 = vsel %vm349, %v351, %v347
    %v353 = vmul.f32 1.0, %v352
    %v354 = vmul.f32 %v353, %v57
    %v355 = vadd.f32 %v354, %v58
    %356 = vrot.lane.b32.xlu0 %v355, 96
    %v357 = vpop.permute.xlu0 %356
    %358 = vrot.lane.b32.xlu0 %v355, 64
    %v359 = vpop.permute.xlu0 %358
    %360 = vrot.lane.b32.xlu0 %v355, 32
    %v361 = vpop.permute.xlu0 %360
    %v362 = vmul.f32 %v357, 0.0
    %v363 = vmul.f32 %v355, %v361
    %v364 = vadd.f32 %v362, %v363
    %v365 = vtanh.pop %v364
    %v366 = vmul.f32 %v359, %v365
    %v367 = vsel %vm59, %v366, 0.0
    %v368 = vpack.c.bf16 %v269, %v269
    %369 = vmatpush.bf16.msra.mxu0 %v214
    %370 = vmatpush.bf16.msra.mxu0 %v213
    %371 = vmatpush.bf16.msra.mxu0 %v212
    %372 = vmatpush.bf16.msra.mxu0 %v211
    %373 = vmatpush.bf16.msra.mxu0 %v210
    %374 = vmatpush.bf16.msra.mxu0 %v209
    %375 = vmatpush.bf16.msra.mxu0 %v208
    %376 = vmatpush.bf16.msra.mxu0 %v207
    %377 = vmatmul.bf16.gmra.mxu0 %v368
    %v378 = vpop.f32.mrf.mxu0
    %v379 = vadd.f32 0.0, %v378
    %v380 = vpop.f32.mrf.mxu0
    %381 = vdwg.mxu0
    %v382 = vadd.f32 %v119, %v379
    %v383 = vxor.u32 %v382, 2147483648
    %v384 = vmul.f32 %v383, 1.442695
    %v385 = vpow.pop %v384
    %v386 = vadd.f32 %v385, 1.0
    %v387 = vrcp.pop %v386
    %v388 = vmul.f32 %v386, %v387
    %v389 = vsub.f32 1.0, %v388
    %v390 = vmul.f32 %v387, %v389
    %v391 = vadd.f32 %v387, %v390
    %vm392 = vweird.f32 %v386
    %vm393 = vweird.f32 %v387
    %vm394 = vmor %vm392, %vm393
    %v395 = vsel %vm394, %v387, %v391
    %v396 = vand.u32 2147483647, %v386
    %vm397 = vcmp.eq.f32.partialorder %v396, 8.507059e+37
    %v398 = vand.u32 %v386, 2147483648
    %v399 = vor.u32 1.1754944e-38, %v398
    %v400 = vsel %vm397, %v399, %v395
    %v401 = vmul.f32 1.0, %v400
    %v402 = vmul.f32 %v401, %v57
    %v403 = vadd.f32 %v402, %v58
    %404 = vrot.lane.b32.xlu0 %v403, 96
    %v405 = vpop.permute.xlu0 %404
    %406 = vrot.lane.b32.xlu0 %v403, 64
    %v407 = vpop.permute.xlu0 %406
    %408 = vrot.lane.b32.xlu0 %v403, 32
    %v409 = vpop.permute.xlu0 %408
    %v410 = vmul.f32 %v405, %v266
    %v411 = vmul.f32 %v403, %v409
    %v412 = vadd.f32 %v410, %v411
    %v413 = vtanh.pop %v412
    %v414 = vmul.f32 %v407, %v413
    %v415 = vsel %vm59, %v414, 0.0
    %416 = vrot.lane.b32.xlu0 %v367, 32
    %v417 = vpop.permute.xlu0 %416
    %v418 = vadd.f32 %v415, %v417
    %v419 = vpack.c.bf16 %v418, %v418
    %420 = vmatpush.bf16.msra.mxu0 %v313
    %421 = vmatpush.bf16.msra.mxu0 %v312
    %422 = vmatpush.bf16.msra.mxu0 %v311
    %423 = vmatpush.bf16.msra.mxu0 %v310
    %424 = vmatpush.bf16.msra.mxu0 %v309
    %425 = vmatpush.bf16.msra.mxu0 %v308
    %426 = vmatpush.bf16.msra.mxu0 %v307
    %427 = vmatpush.bf16.msra.mxu0 %v306
    %428 = vmatmul.bf16.gmra.mxu0 %v419
    %v429 = vpop.f32.mrf.mxu0
    %v430 = vadd.f32 %v173, %v429
    %v431 = vpop.f32.mrf.mxu0
    %432 = vdwg.mxu0
    %v433 = vxor.u32 %v430, 2147483648
    %v434 = vmul.f32 %v433, 1.442695
    %v435 = vpow.pop %v434
    %v436 = vadd.f32 %v435, 1.0
    %v437 = vrcp.pop %v436
    %v438 = vmul.f32 %v436, %v437
    %v439 = vsub.f32 1.0, %v438
    %v440 = vmul.f32 %v437, %v439
    %v441 = vadd.f32 %v437, %v440
    %vm442 = vweird.f32 %v436
    %vm443 = vweird.f32 %v437
    %vm444 = vmor %vm442, %vm443
    %v445 = vsel %vm444, %v437, %v441
    %v446 = vand.u32 2147483647, %v436
    %vm447 = vcmp.eq.f32.partialorder %v446, 8.507059e+37
    %v448 = vand.u32 %v436, 2147483648
    %v449 = vor.u32 1.1754944e-38, %v448
    %v450 = vsel %vm447, %v449, %v445
    %v451 = vmul.f32 1.0, %v450
    %v452 = vmul.f32 %v451, %v57
    %v453 = vadd.f32 %v452, %v58
    %454 = vrot.lane.b32.xlu0 %v453, 96
    %v455 = vpop.permute.xlu0 %454
    %456 = vrot.lane.b32.xlu0 %v453, 64
    %v457 = vpop.permute.xlu0 %456
    %458 = vrot.lane.b32.xlu0 %v453, 32
    %v459 = vpop.permute.xlu0 %458
    %v460 = vmul.f32 %v455, %v364
    %v461 = vmul.f32 %v453, %v459
    %v462 = vadd.f32 %v460, %v461
    %v463 = vtanh.pop %v462
    %v464 = vmul.f32 %v457, %v463
    %v465 = vsel %vm59, %v464, 0.0
    %v466 = vpack.c.bf16 %v415, %v415
    %467 = vmatpush.bf16.msra.mxu0 %v214
    %468 = vmatpush.bf16.msra.mxu0 %v213
    %469 = vmatpush.bf16.msra.mxu0 %v212
    %470 = vmatpush.bf16.msra.mxu0 %v211
    %471 = vmatpush.bf16.msra.mxu0 %v210
    %472 = vmatpush.bf16.msra.mxu0 %v209
    %473 = vmatpush.bf16.msra.mxu0 %v208
    %474 = vmatpush.bf16.msra.mxu0 %v207
    %475 = vmatmul.bf16.gmra.mxu0 %v466
    %v476 = vpop.f32.mrf.mxu0
    %v477 = vadd.f32 0.0, %v476
    %v478 = vpop.f32.mrf.mxu0
    %479 = vdwg.mxu0
    %v480 = vadd.f32 %v122, %v477
    %v481 = vxor.u32 %v480, 2147483648
    %v482 = vmul.f32 %v481, 1.442695
    %v483 = vpow.pop %v482
    %v484 = vadd.f32 %v483, 1.0
    %v485 = vrcp.pop %v484
    %v486 = vmul.f32 %v484, %v485
    %v487 = vsub.f32 1.0, %v486
    %v488 = vmul.f32 %v485, %v487
    %v489 = vadd.f32 %v485, %v488
    %vm490 = vweird.f32 %v484
    %vm491 = vweird.f32 %v485
    %vm492 = vmor %vm490, %vm491
    %v493 = vsel %vm492, %v485, %v489
    %v494 = vand.u32 2147483647, %v484
    %vm495 = vcmp.eq.f32.partialorder %v494, 8.507059e+37
    %v496 = vand.u32 %v484, 2147483648
    %v497 = vor.u32 1.1754944e-38, %v496
    %v498 = vsel %vm495, %v497, %v493
    %v499 = vmul.f32 1.0, %v498
    %v500 = vmul.f32 %v499, %v57
    %v501 = vadd.f32 %v500, %v58
    %502 = vrot.lane.b32.xlu0 %v501, 96
    %v503 = vpop.permute.xlu0 %502
    %504 = vrot.lane.b32.xlu0 %v501, 64
    %v505 = vpop.permute.xlu0 %504
    %506 = vrot.lane.b32.xlu0 %v501, 32
    %v507 = vpop.permute.xlu0 %506
    %v508 = vmul.f32 %v503, %v412
    %v509 = vmul.f32 %v501, %v507
    %v510 = vadd.f32 %v508, %v509
    %v511 = vtanh.pop %v510
    %v512 = vmul.f32 %v505, %v511
    %v513 = vsel %vm59, %v512, 0.0
    %514 = vrot.lane.b32.xlu0 %v465, 32
    %v515 = vpop.permute.xlu0 %514
    %v516 = vadd.f32 %v513, %v515
    %v517 = vpack.c.bf16 %v516, %v516
    %518 = vmatpush.bf16.msra.mxu0 %v313
    %519 = vmatpush.bf16.msra.mxu0 %v312
    %520 = vmatpush.bf16.msra.mxu0 %v311
    %521 = vmatpush.bf16.msra.mxu0 %v310
    %522 = vmatpush.bf16.msra.mxu0 %v309
    %523 = vmatpush.bf16.msra.mxu0 %v308
    %524 = vmatpush.bf16.msra.mxu0 %v307
    %525 = vmatpush.bf16.msra.mxu0 %v306
    %526 = vmatmul.bf16.gmra.mxu0 %v517
    %v527 = vpop.f32.mrf.mxu0
    %v528 = vadd.f32 %v173, %v527
    %v529 = vpop.f32.mrf.mxu0
    %530 = vdwg.mxu0
    %v531 = vxor.u32 %v528, 2147483648
    %v532 = vmul.f32 %v531, 1.442695
    %v533 = vpow.pop %v532
    %v534 = vadd.f32 %v533, 1.0
    %v535 = vrcp.pop %v534
    %v536 = vmul.f32 %v534, %v535
    %v537 = vsub.f32 1.0, %v536
    %v538 = vmul.f32 %v535, %v537
    %v539 = vadd.f32 %v535, %v538
    %vm540 = vweird.f32 %v534
    %vm541 = vweird.f32 %v535
    %vm542 = vmor %vm540, %vm541
    %v543 = vsel %vm542, %v535, %v539
    %v544 = vand.u32 2147483647, %v534
    %vm545 = vcmp.eq.f32.partialorder %v544, 8.507059e+37
    %v546 = vand.u32 %v534, 2147483648
    %v547 = vor.u32 1.1754944e-38, %v546
    %v548 = vsel %vm545, %v547, %v543
    %v549 = vmul.f32 1.0, %v548
    %v550 = vmul.f32 %v549, %v57
    %v551 = vadd.f32 %v550, %v58
    %552 = vrot.lane.b32.xlu0 %v551, 96
    %v553 = vpop.permute.xlu0 %552
    %554 = vrot.lane.b32.xlu0 %v551, 64
    %v555 = vpop.permute.xlu0 %554
    %556 = vrot.lane.b32.xlu0 %v551, 32
    %v557 = vpop.permute.xlu0 %556
    %v558 = vmul.f32 %v553, %v462
    %v559 = vmul.f32 %v551, %v557
    %v560 = vadd.f32 %v558, %v559
    %v561 = vtanh.pop %v560
    %v562 = vmul.f32 %v555, %v561
    %v563 = vsel %vm59, %v562, 0.0
    %v564 = vpack.c.bf16 %v513, %v513
    %565 = vmatpush.bf16.msra.mxu0 %v214
    %566 = vmatpush.bf16.msra.mxu0 %v213
    %567 = vmatpush.bf16.msra.mxu0 %v212
    %568 = vmatpush.bf16.msra.mxu0 %v211
    %569 = vmatpush.bf16.msra.mxu0 %v210
    %570 = vmatpush.bf16.msra.mxu0 %v209
    %571 = vmatpush.bf16.msra.mxu0 %v208
    %572 = vmatpush.bf16.msra.mxu0 %v207
    %573 = vmatmul.bf16.gmra.mxu0 %v564
    %v574 = vpop.f32.mrf.mxu0
    %v575 = vadd.f32 0.0, %v574
    %v576 = vpop.f32.mrf.mxu0
    %577 = vdwg.mxu0
    %v578 = vadd.f32 %v125, %v575
    %v579 = vxor.u32 %v578, 2147483648
    %v580 = vmul.f32 %v579, 1.442695
    %v581 = vpow.pop %v580
    %v582 = vadd.f32 %v581, 1.0
    %v583 = vrcp.pop %v582
    %v584 = vmul.f32 %v582, %v583
    %v585 = vsub.f32 1.0, %v584
    %v586 = vmul.f32 %v583, %v585
    %v587 = vadd.f32 %v583, %v586
    %vm588 = vweird.f32 %v582
    %vm589 = vweird.f32 %v583
    %vm590 = vmor %vm588, %vm589
    %v591 = vsel %vm590, %v583, %v587
    %v592 = vand.u32 2147483647, %v582
    %vm593 = vcmp.eq.f32.partialorder %v592, 8.507059e+37
    %v594 = vand.u32 %v582, 2147483648
    %v595 = vor.u32 1.1754944e-38, %v594
    %v596 = vsel %vm593, %v595, %v591
    %v597 = vmul.f32 1.0, %v596
    %v598 = vmul.f32 %v597, %v57
    %v599 = vadd.f32 %v598, %v58
    %600 = vrot.lane.b32.xlu0 %v599, 96
    %v601 = vpop.permute.xlu0 %600
    %602 = vrot.lane.b32.xlu0 %v599, 64
    %v603 = vpop.permute.xlu0 %602
    %604 = vrot.lane.b32.xlu0 %v599, 32
    %v605 = vpop.permute.xlu0 %604
    %v606 = vmul.f32 %v601, %v510
    %v607 = vmul.f32 %v599, %v605
    %v608 = vadd.f32 %v606, %v607
    %v609 = vtanh.pop %v608
    %v610 = vmul.f32 %v603, %v609
    %v611 = vsel %vm59, %v610, 0.0
    %612 = vrot.lane.b32.xlu0 %v563, 32
    %v613 = vpop.permute.xlu0 %612
    %v614 = vadd.f32 %v611, %v613
    %v615 = vpack.c.bf16 %v614, %v614
    %616 = vmatpush.bf16.msra.mxu0 %v313
    %617 = vmatpush.bf16.msra.mxu0 %v312
    %618 = vmatpush.bf16.msra.mxu0 %v311
    %619 = vmatpush.bf16.msra.mxu0 %v310
    %620 = vmatpush.bf16.msra.mxu0 %v309
    %621 = vmatpush.bf16.msra.mxu0 %v308
    %622 = vmatpush.bf16.msra.mxu0 %v307
    %623 = vmatpush.bf16.msra.mxu0 %v306
    %624 = vmatmul.bf16.gmra.mxu0 %v615
    %v625 = vpop.f32.mrf.mxu0
    %v626 = vadd.f32 %v173, %v625
    %v627 = vpop.f32.mrf.mxu0
    %628 = vdwg.mxu0
    %v629 = vxor.u32 %v626, 2147483648
    %v630 = vmul.f32 %v629, 1.442695
    %v631 = vpow.pop %v630
    %v632 = vadd.f32 %v631, 1.0
    %v633 = vrcp.pop %v632
    %v634 = vmul.f32 %v632, %v633
    %v635 = vsub.f32 1.0, %v634
    %v636 = vmul.f32 %v633, %v635
    %v637 = vadd.f32 %v633, %v636
    %vm638 = vweird.f32 %v632
    %vm639 = vweird.f32 %v633
    %vm640 = vmor %vm638, %vm639
    %v641 = vsel %vm640, %v633, %v637
    %v642 = vand.u32 2147483647, %v632
    %vm643 = vcmp.eq.f32.partialorder %v642, 8.507059e+37
    %v644 = vand.u32 %v632, 2147483648
    %v645 = vor.u32 1.1754944e-38, %v644
    %v646 = vsel %vm643, %v645, %v641
    %v647 = vmul.f32 1.0, %v646
    %v648 = vmul.f32 %v647, %v57
    %v649 = vadd.f32 %v648, %v58
    %650 = vrot.lane.b32.xlu0 %v649, 96
    %v651 = vpop.permute.xlu0 %650
    %652 = vrot.lane.b32.xlu0 %v649, 64
    %v653 = vpop.permute.xlu0 %652
    %654 = vrot.lane.b32.xlu0 %v649, 32
    %v655 = vpop.permute.xlu0 %654
    %v656 = vmul.f32 %v651, %v560
    %v657 = vmul.f32 %v649, %v655
    %v658 = vadd.f32 %v656, %v657
    %v659 = vtanh.pop %v658
    %v660 = vmul.f32 %v653, %v659
    %v661 = vsel %vm59, %v660, 0.0
    %v662 = vpack.c.bf16 %v611, %v611
    %663 = vmatpush.bf16.msra.mxu0 %v214
    %664 = vmatpush.bf16.msra.mxu0 %v213
    %665 = vmatpush.bf16.msra.mxu0 %v212
    %666 = vmatpush.bf16.msra.mxu0 %v211
    %667 = vmatpush.bf16.msra.mxu0 %v210
    %668 = vmatpush.bf16.msra.mxu0 %v209
    %669 = vmatpush.bf16.msra.mxu0 %v208
    %670 = vmatpush.bf16.msra.mxu0 %v207
    %671 = vmatmul.bf16.gmra.mxu0 %v662
    %v672 = vpop.f32.mrf.mxu0
    %v673 = vadd.f32 0.0, %v672
    %v674 = vpop.f32.mrf.mxu0
    %675 = vdwg.mxu0
    %v676 = vadd.f32 %v128, %v673
    %v677 = vxor.u32 %v676, 2147483648
    %v678 = vmul.f32 %v677, 1.442695
    %v679 = vpow.pop %v678
    %v680 = vadd.f32 %v679, 1.0
    %v681 = vrcp.pop %v680
    %v682 = vmul.f32 %v680, %v681
    %v683 = vsub.f32 1.0, %v682
    %v684 = vmul.f32 %v681, %v683
    %v685 = vadd.f32 %v681, %v684
    %vm686 = vweird.f32 %v680
    %vm687 = vweird.f32 %v681
    %vm688 = vmor %vm686, %vm687
    %v689 = vsel %vm688, %v681, %v685
    %v690 = vand.u32 2147483647, %v680
    %vm691 = vcmp.eq.f32.partialorder %v690, 8.507059e+37
    %v692 = vand.u32 %v680, 2147483648
    %v693 = vor.u32 1.1754944e-38, %v692
    %v694 = vsel %vm691, %v693, %v689
    %v695 = vmul.f32 1.0, %v694
    %v696 = vmul.f32 %v695, %v57
    %v697 = vadd.f32 %v696, %v58
    %698 = vrot.lane.b32.xlu0 %v697, 96
    %v699 = vpop.permute.xlu0 %698
    %700 = vrot.lane.b32.xlu0 %v697, 64
    %v701 = vpop.permute.xlu0 %700
    %702 = vrot.lane.b32.xlu0 %v697, 32
    %v703 = vpop.permute.xlu0 %702
    %v704 = vmul.f32 %v699, %v608
    %v705 = vmul.f32 %v697, %v703
    %v706 = vadd.f32 %v704, %v705
    %v707 = vtanh.pop %v706
    %v708 = vmul.f32 %v701, %v707
    %v709 = vsel %vm59, %v708, 0.0
    %710 = vrot.lane.b32.xlu0 %v661, 32
    %v711 = vpop.permute.xlu0 %710
    %v712 = vadd.f32 %v709, %v711
    %v713 = vpack.c.bf16 %v712, %v712
    %714 = vmatpush.bf16.msra.mxu0 %v313
    %715 = vmatpush.bf16.msra.mxu0 %v312
    %716 = vmatpush.bf16.msra.mxu0 %v311
    %717 = vmatpush.bf16.msra.mxu0 %v310
    %718 = vmatpush.bf16.msra.mxu0 %v309
    %719 = vmatpush.bf16.msra.mxu0 %v308
    %720 = vmatpush.bf16.msra.mxu0 %v307
    %721 = vmatpush.bf16.msra.mxu0 %v306
    %722 = vmatmul.bf16.gmra.mxu0 %v713
    %v723 = vpop.f32.mrf.mxu0
    %v724 = vadd.f32 %v173, %v723
    %v725 = vpop.f32.mrf.mxu0
    %726 = vdwg.mxu0
    %v727 = vxor.u32 %v724, 2147483648
    %v728 = vmul.f32 %v727, 1.442695
    %v729 = vpow.pop %v728
    %v730 = vadd.f32 %v729, 1.0
    %v731 = vrcp.pop %v730
    %v732 = vmul.f32 %v730, %v731
    %v733 = vsub.f32 1.0, %v732
    %v734 = vmul.f32 %v731, %v733
    %v735 = vadd.f32 %v731, %v734
    %vm736 = vweird.f32 %v730
    %vm737 = vweird.f32 %v731
    %vm738 = vmor %vm736, %vm737
    %v739 = vsel %vm738, %v731, %v735
    %v740 = vand.u32 2147483647, %v730
    %vm741 = vcmp.eq.f32.partialorder %v740, 8.507059e+37
    %v742 = vand.u32 %v730, 2147483648
    %v743 = vor.u32 1.1754944e-38, %v742
    %v744 = vsel %vm741, %v743, %v739
    %v745 = vmul.f32 1.0, %v744
    %v746 = vmul.f32 %v745, %v57
    %v747 = vadd.f32 %v746, %v58
    %748 = vrot.lane.b32.xlu0 %v747, 96
    %v749 = vpop.permute.xlu0 %748
    %750 = vrot.lane.b32.xlu0 %v747, 64
    %v751 = vpop.permute.xlu0 %750
    %752 = vrot.lane.b32.xlu0 %v747, 32
    %v753 = vpop.permute.xlu0 %752
    %v754 = vmul.f32 %v749, %v658
    %v755 = vmul.f32 %v747, %v753
    %v756 = vadd.f32 %v754, %v755
    %v757 = vtanh.pop %v756
    %v758 = vmul.f32 %v751, %v757
    %v759 = vsel %vm59, %v758, 0.0
    %v760 = vpack.c.bf16 %v709, %v709
    %761 = vmatpush.bf16.msra.mxu0 %v214
    %762 = vmatpush.bf16.msra.mxu0 %v213
    %763 = vmatpush.bf16.msra.mxu0 %v212
    %764 = vmatpush.bf16.msra.mxu0 %v211
    %765 = vmatpush.bf16.msra.mxu0 %v210
    %766 = vmatpush.bf16.msra.mxu0 %v209
    %767 = vmatpush.bf16.msra.mxu0 %v208
    %768 = vmatpush.bf16.msra.mxu0 %v207
    %769 = vmatmul.bf16.gmra.mxu0 %v760
    %v770 = vpop.f32.mrf.mxu0
    %v771 = vadd.f32 0.0, %v770
    %v772 = vpop.f32.mrf.mxu0
    %773 = vdwg.mxu0
    %v774 = vadd.f32 %v131, %v771
    %v775 = vxor.u32 %v774, 2147483648
    %v776 = vmul.f32 %v775, 1.442695
    %v777 = vpow.pop %v776
    %v778 = vadd.f32 %v777, 1.0
    %v779 = vrcp.pop %v778
    %v780 = vmul.f32 %v778, %v779
    %v781 = vsub.f32 1.0, %v780
    %v782 = vmul.f32 %v779, %v781
    %v783 = vadd.f32 %v779, %v782
    %vm784 = vweird.f32 %v778
    %vm785 = vweird.f32 %v779
    %vm786 = vmor %vm784, %vm785
    %v787 = vsel %vm786, %v779, %v783
    %v788 = vand.u32 2147483647, %v778
    %vm789 = vcmp.eq.f32.partialorder %v788, 8.507059e+37
    %v790 = vand.u32 %v778, 2147483648
    %v791 = vor.u32 1.1754944e-38, %v790
    %v792 = vsel %vm789, %v791, %v787
    %v793 = vmul.f32 1.0, %v792
    %v794 = vmul.f32 %v793, %v57
    %v795 = vadd.f32 %v794, %v58
    %796 = vrot.lane.b32.xlu0 %v795, 96
    %v797 = vpop.permute.xlu0 %796
    %798 = vrot.lane.b32.xlu0 %v795, 64
    %v799 = vpop.permute.xlu0 %798
    %800 = vrot.lane.b32.xlu0 %v795, 32
    %v801 = vpop.permute.xlu0 %800
    %v802 = vmul.f32 %v797, %v706
    %v803 = vmul.f32 %v795, %v801
    %v804 = vadd.f32 %v802, %v803
    %v805 = vtanh.pop %v804
    %v806 = vmul.f32 %v799, %v805
    %v807 = vsel %vm59, %v806, 0.0
    %808 = vrot.lane.b32.xlu0 %v759, 32
    %v809 = vpop.permute.xlu0 %808
    %v810 = vadd.f32 %v807, %v809
    %v811 = vpack.c.bf16 %v810, %v810
    %812 = vmatpush.bf16.msra.mxu0 %v313
    %813 = vmatpush.bf16.msra.mxu0 %v312
    %814 = vmatpush.bf16.msra.mxu0 %v311
    %815 = vmatpush.bf16.msra.mxu0 %v310
    %816 = vmatpush.bf16.msra.mxu0 %v309
    %817 = vmatpush.bf16.msra.mxu0 %v308
    %818 = vmatpush.bf16.msra.mxu0 %v307
    %819 = vmatpush.bf16.msra.mxu0 %v306
    %820 = vmatmul.bf16.gmra.mxu0 %v811
    %v821 = vpop.f32.mrf.mxu0
    %v822 = vadd.f32 %v173, %v821
    %v823 = vpop.f32.mrf.mxu0
    %824 = vdwg.mxu0
    %v825 = vxor.u32 %v822, 2147483648
    %v826 = vmul.f32 %v825, 1.442695
    %v827 = vpow.pop %v826
    %v828 = vadd.f32 %v827, 1.0
    %v829 = vrcp.pop %v828
    %v830 = vmul.f32 %v828, %v829
    %v831 = vsub.f32 1.0, %v830
    %v832 = vmul.f32 %v829, %v831
    %v833 = vadd.f32 %v829, %v832
    %vm834 = vweird.f32 %v828
    %vm835 = vweird.f32 %v829
    %vm836 = vmor %vm834, %vm835
    %v837 = vsel %vm836, %v829, %v833
    %v838 = vand.u32 2147483647, %v828
    %vm839 = vcmp.eq.f32.partialorder %v838, 8.507059e+37
    %v840 = vand.u32 %v828, 2147483648
    %v841 = vor.u32 1.1754944e-38, %v840
    %v842 = vsel %vm839, %v841, %v837
    %v843 = vmul.f32 1.0, %v842
    %v844 = vmul.f32 %v843, %v57
    %v845 = vadd.f32 %v844, %v58
    %846 = vrot.lane.b32.xlu0 %v845, 96
    %v847 = vpop.permute.xlu0 %846
    %848 = vrot.lane.b32.xlu0 %v845, 64
    %v849 = vpop.permute.xlu0 %848
    %850 = vrot.lane.b32.xlu0 %v845, 32
    %v851 = vpop.permute.xlu0 %850
    %v852 = vmul.f32 %v847, %v756
    %v853 = vmul.f32 %v845, %v851
    %v854 = vadd.f32 %v852, %v853
    %v855 = vtanh.pop %v854
    %v856 = vmul.f32 %v849, %v855
    %v857 = vsel %vm59, %v856, 0.0
    %v858 = vpack.c.bf16 %v807, %v807
    %859 = vmatpush.bf16.msra.mxu0 %v214
    %860 = vmatpush.bf16.msra.mxu0 %v213
    %861 = vmatpush.bf16.msra.mxu0 %v212
    %862 = vmatpush.bf16.msra.mxu0 %v211
    %863 = vmatpush.bf16.msra.mxu0 %v210
    %864 = vmatpush.bf16.msra.mxu0 %v209
    %865 = vmatpush.bf16.msra.mxu0 %v208
    %866 = vmatpush.bf16.msra.mxu0 %v207
    %867 = vmatmul.bf16.gmra.mxu0 %v858
    %v868 = vpop.f32.mrf.mxu0
    %v869 = vadd.f32 0.0, %v868
    %v870 = vpop.f32.mrf.mxu0
    %871 = vdwg.mxu0
    %v872 = vadd.f32 %v134, %v869
    %v873 = vxor.u32 %v872, 2147483648
    %v874 = vmul.f32 %v873, 1.442695
    %v875 = vpow.pop %v874
    %v876 = vadd.f32 %v875, 1.0
    %v877 = vrcp.pop %v876
    %v878 = vmul.f32 %v876, %v877
    %v879 = vsub.f32 1.0, %v878
    %v880 = vmul.f32 %v877, %v879
    %v881 = vadd.f32 %v877, %v880
    %vm882 = vweird.f32 %v876
    %vm883 = vweird.f32 %v877
    %vm884 = vmor %vm882, %vm883
    %v885 = vsel %vm884, %v877, %v881
    %v886 = vand.u32 2147483647, %v876
    %vm887 = vcmp.eq.f32.partialorder %v886, 8.507059e+37
    %v888 = vand.u32 %v876, 2147483648
    %v889 = vor.u32 1.1754944e-38, %v888
    %v890 = vsel %vm887, %v889, %v885
    %v891 = vmul.f32 1.0, %v890
    %v892 = vmul.f32 %v891, %v57
    %v893 = vadd.f32 %v892, %v58
    %894 = vrot.lane.b32.xlu0 %v893, 96
    %v895 = vpop.permute.xlu0 %894
    %896 = vrot.lane.b32.xlu0 %v893, 64
    %v897 = vpop.permute.xlu0 %896
    %898 = vrot.lane.b32.xlu0 %v893, 32
    %v899 = vpop.permute.xlu0 %898
    %v900 = vmul.f32 %v895, %v804
    %v901 = vmul.f32 %v893, %v899
    %v902 = vadd.f32 %v900, %v901
    %v903 = vtanh.pop %v902
    %v904 = vmul.f32 %v897, %v903
    %v905 = vsel %vm59, %v904, 0.0
    %906 = vrot.lane.b32.xlu0 %v857, 32
    %v907 = vpop.permute.xlu0 %906
    %v908 = vadd.f32 %v905, %v907
    %v909 = vpack.c.bf16 %v908, %v908
    %910 = vmatpush.bf16.msra.mxu0 %v313
    %911 = vmatpush.bf16.msra.mxu0 %v312
    %912 = vmatpush.bf16.msra.mxu0 %v311
    %913 = vmatpush.bf16.msra.mxu0 %v310
    %914 = vmatpush.bf16.msra.mxu0 %v309
    %915 = vmatpush.bf16.msra.mxu0 %v308
    %916 = vmatpush.bf16.msra.mxu0 %v307
    %917 = vmatpush.bf16.msra.mxu0 %v306
    %918 = vmatmul.bf16.gmra.mxu0 %v909
    %v919 = vpop.f32.mrf.mxu0
    %v920 = vadd.f32 %v173, %v919
    %v921 = vpop.f32.mrf.mxu0
    %922 = vdwg.mxu0
    %v923 = vxor.u32 %v920, 2147483648
    %v924 = vmul.f32 %v923, 1.442695
    %v925 = vpow.pop %v924
    %v926 = vadd.f32 %v925, 1.0
    %v927 = vrcp.pop %v926
    %v928 = vmul.f32 %v926, %v927
    %v929 = vsub.f32 1.0, %v928
    %v930 = vmul.f32 %v927, %v929
    %v931 = vadd.f32 %v927, %v930
    %vm932 = vweird.f32 %v926
    %vm933 = vweird.f32 %v927
    %vm934 = vmor %vm932, %vm933
    %v935 = vsel %vm934, %v927, %v931
    %v936 = vand.u32 2147483647, %v926
    %vm937 = vcmp.eq.f32.partialorder %v936, 8.507059e+37
    %v938 = vand.u32 %v926, 2147483648
    %v939 = vor.u32 1.1754944e-38, %v938
    %v940 = vsel %vm937, %v939, %v935
    %v941 = vmul.f32 1.0, %v940
    %v942 = vmul.f32 %v941, %v57
    %v943 = vadd.f32 %v942, %v58
    %944 = vrot.lane.b32.xlu0 %v943, 96
    %v945 = vpop.permute.xlu0 %944
    %946 = vrot.lane.b32.xlu0 %v943, 64
    %v947 = vpop.permute.xlu0 %946
    %948 = vrot.lane.b32.xlu0 %v943, 32
    %v949 = vpop.permute.xlu0 %948
    %v950 = vmul.f32 %v945, %v854
    %v951 = vmul.f32 %v943, %v949
    %v952 = vadd.f32 %v950, %v951
    %v953 = vtanh.pop %v952
    %v954 = vmul.f32 %v947, %v953
    %v955 = vsel %vm59, %v954, 0.0
    %v956 = vpack.c.bf16 %v905, %v905
    %957 = vmatpush.bf16.msra.mxu0 %v214
    %958 = vmatpush.bf16.msra.mxu0 %v213
    %959 = vmatpush.bf16.msra.mxu0 %v212
    %960 = vmatpush.bf16.msra.mxu0 %v211
    %961 = vmatpush.bf16.msra.mxu0 %v210
    %962 = vmatpush.bf16.msra.mxu0 %v209
    %963 = vmatpush.bf16.msra.mxu0 %v208
    %964 = vmatpush.bf16.msra.mxu0 %v207
    %965 = vmatmul.bf16.gmra.mxu0 %v956
    %v966 = vpop.f32.mrf.mxu0
    %v967 = vadd.f32 0.0, %v966
    %v968 = vpop.f32.mrf.mxu0
    %969 = vdwg.mxu0
    %v970 = vadd.f32 %v137, %v967
    %v971 = vxor.u32 %v970, 2147483648
    %v972 = vmul.f32 %v971, 1.442695
    %v973 = vpow.pop %v972
    %v974 = vadd.f32 %v973, 1.0
    %v975 = vrcp.pop %v974
    %v976 = vmul.f32 %v974, %v975
    %v977 = vsub.f32 1.0, %v976
    %v978 = vmul.f32 %v975, %v977
    %v979 = vadd.f32 %v975, %v978
    %vm980 = vweird.f32 %v974
    %vm981 = vweird.f32 %v975
    %vm982 = vmor %vm980, %vm981
    %v983 = vsel %vm982, %v975, %v979
    %v984 = vand.u32 2147483647, %v974
    %vm985 = vcmp.eq.f32.partialorder %v984, 8.507059e+37
    %v986 = vand.u32 %v974, 2147483648
    %v987 = vor.u32 1.1754944e-38, %v986
    %v988 = vsel %vm985, %v987, %v983
    %v989 = vmul.f32 1.0, %v988
    %v990 = vmul.f32 %v989, %v57
    %v991 = vadd.f32 %v990, %v58
    %992 = vrot.lane.b32.xlu0 %v991, 96
    %v993 = vpop.permute.xlu0 %992
    %994 = vrot.lane.b32.xlu0 %v991, 64
    %v995 = vpop.permute.xlu0 %994
    %996 = vrot.lane.b32.xlu0 %v991, 32
    %v997 = vpop.permute.xlu0 %996
    %v998 = vmul.f32 %v993, %v902
    %v999 = vmul.f32 %v991, %v997
    %v1000 = vadd.f32 %v998, %v999
    %v1001 = vtanh.pop %v1000
    %v1002 = vmul.f32 %v995, %v1001
    %v1003 = vsel %vm59, %v1002, 0.0
    %1004 = vrot.lane.b32.xlu0 %v955, 32
    %v1005 = vpop.permute.xlu0 %1004
    %v1006 = vadd.f32 %v1003, %v1005
    %v1007 = vpack.c.bf16 %v1006, %v1006
    %1008 = vmatpush.bf16.msra.mxu0 %v313
    %1009 = vmatpush.bf16.msra.mxu0 %v312
    %1010 = vmatpush.bf16.msra.mxu0 %v311
    %1011 = vmatpush.bf16.msra.mxu0 %v310
    %1012 = vmatpush.bf16.msra.mxu0 %v309
    %1013 = vmatpush.bf16.msra.mxu0 %v308
    %1014 = vmatpush.bf16.msra.mxu0 %v307
    %1015 = vmatpush.bf16.msra.mxu0 %v306
    %1016 = vmatmul.bf16.gmra.mxu0 %v1007
    %v1017 = vpop.f32.mrf.mxu0
    %v1018 = vadd.f32 %v173, %v1017
    %v1019 = vpop.f32.mrf.mxu0
    %1020 = vdwg.mxu0
    %v1021 = vxor.u32 %v1018, 2147483648
    %v1022 = vmul.f32 %v1021, 1.442695
    %v1023 = vpow.pop %v1022
    %v1024 = vadd.f32 %v1023, 1.0
    %v1025 = vrcp.pop %v1024
    %v1026 = vmul.f32 %v1024, %v1025
    %v1027 = vsub.f32 1.0, %v1026
    %v1028 = vmul.f32 %v1025, %v1027
    %v1029 = vadd.f32 %v1025, %v1028
    %vm1030 = vweird.f32 %v1024
    %vm1031 = vweird.f32 %v1025
    %vm1032 = vmor %vm1030, %vm1031
    %v1033 = vsel %vm1032, %v1025, %v1029
    %v1034 = vand.u32 2147483647, %v1024
    %vm1035 = vcmp.eq.f32.partialorder %v1034, 8.507059e+37
    %v1036 = vand.u32 %v1024, 2147483648
    %v1037 = vor.u32 1.1754944e-38, %v1036
    %v1038 = vsel %vm1035, %v1037, %v1033
    %v1039 = vmul.f32 1.0, %v1038
    %v1040 = vmul.f32 %v1039, %v57
    %v1041 = vadd.f32 %v1040, %v58
    %1042 = vrot.lane.b32.xlu0 %v1041, 96
    %v1043 = vpop.permute.xlu0 %1042
    %1044 = vrot.lane.b32.xlu0 %v1041, 64
    %v1045 = vpop.permute.xlu0 %1044
    %1046 = vrot.lane.b32.xlu0 %v1041, 32
    %v1047 = vpop.permute.xlu0 %1046
    %v1048 = vmul.f32 %v1043, %v952
    %v1049 = vmul.f32 %v1041, %v1047
    %v1050 = vadd.f32 %v1048, %v1049
    %v1051 = vtanh.pop %v1050
    %v1052 = vmul.f32 %v1045, %v1051
    %v1053 = vsel %vm59, %v1052, 0.0
    %v1054 = vld [vmem:[#allocation3] sm:$0xff]
    %v1055 = vld [vmem:[#allocation3 + $0x8] sm:$0xff]
    %v1056 = vld [vmem:[#allocation3 + $0x10] sm:$0xff]
    %v1057 = vld [vmem:[#allocation3 + $0x18] sm:$0xff]
    %v1058 = vld [vmem:[#allocation3 + $0x20] sm:$0xff]
    %v1059 = vld [vmem:[#allocation3 + $0x28] sm:$0xff]
    %v1060 = vld [vmem:[#allocation3 + $0x30] sm:$0xff]
    %v1061 = vld [vmem:[#allocation3 + $0x38] sm:$0xff]
    %v1062 = vld [vmem:[#allocation3 + $0x40] sm:$0xff]
    %v1063 = vld [vmem:[#allocation3 + $0x48] sm:$0xff]
    %v1064 = vld [vmem:[#allocation3 + $0x50] sm:$0xff]
    %v1065 = vld [vmem:[#allocation3 + $0x58] sm:$0xff]
    %v1066 = vld [vmem:[#allocation3 + $0x60] sm:$0xff]
    %v1067 = vld [vmem:[#allocation3 + $0x68] sm:$0xff]
    %v1068 = vld [vmem:[#allocation3 + $0x70] sm:$0xff]
    %v1069 = vld [vmem:[#allocation3 + $0x78] sm:$0xff]
    %v1070 = vld [vmem:[#allocation3 + $0x80] sm:$0xff]
    %v1071 = vld [vmem:[#allocation3 + $0x88] sm:$0xff]
    %v1072 = vld [vmem:[#allocation3 + $0x90] sm:$0xff]
    %v1073 = vld [vmem:[#allocation3 + $0x98] sm:$0xff]
    %v1074 = vld [vmem:[#allocation3 + $0xa0] sm:$0xff]
    %v1075 = vld [vmem:[#allocation3 + $0xa8] sm:$0xff]
    %v1076 = vld [vmem:[#allocation3 + $0xb0] sm:$0xff]
    %v1077 = vld [vmem:[#allocation3 + $0xb8] sm:$0xff]
    %v1078 = vld [vmem:[#allocation3 + $0xc0] sm:$0xff]
    %v1079 = vld [vmem:[#allocation3 + $0xc8] sm:$0xff]
    %v1080 = vld [vmem:[#allocation3 + $0xd0] sm:$0xff]
    %v1081 = vld [vmem:[#allocation3 + $0xd8] sm:$0xff]
    %v1082 = vld [vmem:[#allocation3 + $0xe0] sm:$0xff]
    %v1083 = vld [vmem:[#allocation3 + $0xe8] sm:$0xff]
    %v1084 = vld [vmem:[#allocation3 + $0xf0] sm:$0xff]
    %v1085 = vld [vmem:[#allocation3 + $0xf8] sm:$0xff]
    %v1086 = vld [vmem:[#allocation3 + $0x100] sm:$0xff]
    %v1087 = vld [vmem:[#allocation3 + $0x108] sm:$0xff]
    %v1088 = vld [vmem:[#allocation3 + $0x110] sm:$0xff]
    %v1089 = vld [vmem:[#allocation3 + $0x118] sm:$0xff]
    %v1090 = vld [vmem:[#allocation3 + $0x120] sm:$0xff]
    %v1091 = vld [vmem:[#allocation3 + $0x128] sm:$0xff]
    %v1092 = vld [vmem:[#allocation3 + $0x130] sm:$0xff]
    %v1093 = vld [vmem:[#allocation3 + $0x138] sm:$0xff]
    %v1094 = vld [vmem:[#allocation3 + $0x140] sm:$0xff]
    %v1095 = vld [vmem:[#allocation3 + $0x148] sm:$0xff]
    %v1096 = vld [vmem:[#allocation3 + $0x150] sm:$0xff]
    %v1097 = vld [vmem:[#allocation3 + $0x158] sm:$0xff]
    %v1098 = vld [vmem:[#allocation3 + $0x160] sm:$0xff]
    %v1099 = vld [vmem:[#allocation3 + $0x168] sm:$0xff]
    %v1100 = vld [vmem:[#allocation3 + $0x170] sm:$0xff]
    %v1101 = vld [vmem:[#allocation3 + $0x178] sm:$0xff]
    %v1102 = vld [vmem:[#allocation3 + $0x180] sm:$0xff]
    %v1103 = vld [vmem:[#allocation3 + $0x188] sm:$0xff]
    %v1104 = vld [vmem:[#allocation3 + $0x190] sm:$0xff]
    %v1105 = vld [vmem:[#allocation3 + $0x198] sm:$0xff]
    %v1106 = vld [vmem:[#allocation3 + $0x1a0] sm:$0xff]
    %v1107 = vld [vmem:[#allocation3 + $0x1a8] sm:$0xff]
    %v1108 = vld [vmem:[#allocation3 + $0x1b0] sm:$0xff]
    %v1109 = vld [vmem:[#allocation3 + $0x1b8] sm:$0xff]
    %v1110 = vld [vmem:[#allocation3 + $0x1c0] sm:$0xff]
    %v1111 = vld [vmem:[#allocation3 + $0x1c8] sm:$0xff]
    %v1112 = vld [vmem:[#allocation3 + $0x1d0] sm:$0xff]
    %v1113 = vld [vmem:[#allocation3 + $0x1d8] sm:$0xff]
    %v1114 = vld [vmem:[#allocation3 + $0x1e0] sm:$0xff]
    %v1115 = vld [vmem:[#allocation3 + $0x1e8] sm:$0xff]
    %v1116 = vld [vmem:[#allocation3 + $0x1f0] sm:$0xff]
    %v1117 = vld [vmem:[#allocation3 + $0x1f8] sm:$0xff]
    %v1118 = vld [vmem:[#allocation3 + $0x200] sm:$0xff]
    %v1119 = vld [vmem:[#allocation3 + $0x208] sm:$0xff]
    %v1120 = vld [vmem:[#allocation3 + $0x210] sm:$0xff]
    %v1121 = vld [vmem:[#allocation3 + $0x218] sm:$0xff]
    %v1122 = vld [vmem:[#allocation3 + $0x220] sm:$0xff]
    %v1123 = vld [vmem:[#allocation3 + $0x228] sm:$0xff]
    %v1124 = vld [vmem:[#allocation3 + $0x230] sm:$0xff]
    %v1125 = vld [vmem:[#allocation3 + $0x238] sm:$0xff]
    %v1126 = vld [vmem:[#allocation3 + $0x240] sm:$0xff]
    %v1127 = vld [vmem:[#allocation3 + $0x248] sm:$0xff]
    %v1128 = vld [vmem:[#allocation3 + $0x250] sm:$0xff]
    %v1129 = vld [vmem:[#allocation3 + $0x258] sm:$0xff]
    %v1130 = vld [vmem:[#allocation3 + $0x260] sm:$0xff]
    %v1131 = vld [vmem:[#allocation3 + $0x268] sm:$0xff]
    %v1132 = vld [vmem:[#allocation3 + $0x270] sm:$0xff]
    %v1133 = vld [vmem:[#allocation3 + $0x278] sm:$0xff]
    %v1134 = vld [vmem:[#allocation3 + $0x280] sm:$0xff]
    %v1135 = vld [vmem:[#allocation3 + $0x288] sm:$0xff]
    %v1136 = vld [vmem:[#allocation3 + $0x290] sm:$0xff]
    %v1137 = vld [vmem:[#allocation3 + $0x298] sm:$0xff]
    %v1138 = vld [vmem:[#allocation3 + $0x2a0] sm:$0xff]
    %v1139 = vld [vmem:[#allocation3 + $0x2a8] sm:$0xff]
    %v1140 = vld [vmem:[#allocation3 + $0x2b0] sm:$0xff]
    %v1141 = vld [vmem:[#allocation3 + $0x2b8] sm:$0xff]
    %v1142 = vld [vmem:[#allocation3 + $0x2c0] sm:$0xff]
    %v1143 = vld [vmem:[#allocation3 + $0x2c8] sm:$0xff]
    %v1144 = vld [vmem:[#allocation3 + $0x2d0] sm:$0xff]
    %v1145 = vld [vmem:[#allocation3 + $0x2d8] sm:$0xff]
    %v1146 = vld [vmem:[#allocation3 + $0x2e0] sm:$0xff]
    %v1147 = vld [vmem:[#allocation3 + $0x2e8] sm:$0xff]
    %v1148 = vld [vmem:[#allocation3 + $0x2f0] sm:$0xff]
    %v1149 = vld [vmem:[#allocation3 + $0x2f8] sm:$0xff]
    %v1150 = vld [vmem:[#allocation3 + $0x300] sm:$0xff]
    %v1151 = vld [vmem:[#allocation3 + $0x308] sm:$0xff]
    %v1152 = vld [vmem:[#allocation3 + $0x310] sm:$0xff]
    %v1153 = vld [vmem:[#allocation3 + $0x318] sm:$0xff]
    %v1154 = vld [vmem:[#allocation3 + $0x320] sm:$0xff]
    %v1155 = vld [vmem:[#allocation3 + $0x328] sm:$0xff]
    %v1156 = vld [vmem:[#allocation3 + $0x330] sm:$0xff]
    %v1157 = vld [vmem:[#allocation3 + $0x338] sm:$0xff]
    %v1158 = vld [vmem:[#allocation3 + $0x340] sm:$0xff]
    %v1159 = vld [vmem:[#allocation3 + $0x348] sm:$0xff]
    %v1160 = vld [vmem:[#allocation3 + $0x350] sm:$0xff]
    %v1161 = vld [vmem:[#allocation3 + $0x358] sm:$0xff]
    %v1162 = vld [vmem:[#allocation3 + $0x360] sm:$0xff]
    %v1163 = vld [vmem:[#allocation3 + $0x368] sm:$0xff]
    %v1164 = vld [vmem:[#allocation3 + $0x370] sm:$0xff]
    %v1165 = vld [vmem:[#allocation3 + $0x378] sm:$0xff]
    %v1166 = vld [vmem:[#allocation3 + $0x380] sm:$0xff]
    %v1167 = vld [vmem:[#allocation3 + $0x388] sm:$0xff]
    %v1168 = vld [vmem:[#allocation3 + $0x390] sm:$0xff]
    %v1169 = vld [vmem:[#allocation3 + $0x398] sm:$0xff]
    %v1170 = vld [vmem:[#allocation3 + $0x3a0] sm:$0xff]
    %v1171 = vld [vmem:[#allocation3 + $0x3a8] sm:$0xff]
    %v1172 = vld [vmem:[#allocation3 + $0x3b0] sm:$0xff]
    %v1173 = vld [vmem:[#allocation3 + $0x3b8] sm:$0xff]
    %v1174 = vld [vmem:[#allocation3 + $0x3c0] sm:$0xff]
    %v1175 = vld [vmem:[#allocation3 + $0x3c8] sm:$0xff]
    %v1176 = vld [vmem:[#allocation3 + $0x3d0] sm:$0xff]
    %v1177 = vld [vmem:[#allocation3 + $0x3d8] sm:$0xff]
    %v1178 = vld [vmem:[#allocation3 + $0x3e0] sm:$0xff]
    %v1179 = vld [vmem:[#allocation3 + $0x3e8] sm:$0xff]
    %v1180 = vld [vmem:[#allocation3 + $0x3f0] sm:$0xff]
    %v1181 = vld [vmem:[#allocation3 + $0x3f8] sm:$0xff]
    %v1182 = vld [vmem:[%s7] sm:$0xff]
    %v1184 = vperm.slane %v1182, 0
    %v1185 = vperm.slane %v1182, 1
    %v1186 = vperm.slane %v1182, 2
    %v1187 = vperm.slane %v1182, 3
    %v1188 = vperm.slane %v1182, 4
    %v1189 = vperm.slane %v1182, 5
    %v1190 = vperm.slane %v1182, 6
    %v1191 = vperm.slane %v1182, 7
    %1200 = vmatpush.msra.mxu0 %v1174
    %1201 = vmatpush.msra.mxu0 %v1166
    %1202 = vmatpush.msra.mxu0 %v1158
    %1203 = vmatpush.msra.mxu0 %v1150
    %1204 = vmatpush.msra.mxu0 %v1142
    %1205 = vmatpush.msra.mxu0 %v1134
    %1206 = vmatpush.msra.mxu0 %v1126
    %1207 = vmatpush.msra.mxu0 %v1118
    %1208 = vmatpush.msra.mxu0 %v1110
    %1209 = vmatpush.msra.mxu0 %v1102
    %1210 = vmatpush.msra.mxu0 %v1094
    %1211 = vmatpush.msra.mxu0 %v1086
    %1212 = vmatpush.msra.mxu0 %v1078
    %1213 = vmatpush.msra.mxu0 %v1070
    %1214 = vmatpush.msra.mxu0 %v1062
    %1215 = vmatpush.msra.mxu0 %v1054
    %1216 = vmatmul.f32.gmra.mxu0 %v1053
    %v1217 = vpop.f32.mrf.mxu0
    %v1218 = vadd.f32 %v1184, %v1217
    %1219 = vdwg.mxu0
    %1220 = vmatpush.msra.mxu0 %v1175
    %1221 = vmatpush.msra.mxu0 %v1167
    %1222 = vmatpush.msra.mxu0 %v1159
    %1223 = vmatpush.msra.mxu0 %v1151
    %1224 = vmatpush.msra.mxu0 %v1143
    %1225 = vmatpush.msra.mxu0 %v1135
    %1226 = vmatpush.msra.mxu0 %v1127
    %1227 = vmatpush.msra.mxu0 %v1119
    %1228 = vmatpush.msra.mxu0 %v1111
    %1229 = vmatpush.msra.mxu0 %v1103
    %1230 = vmatpush.msra.mxu0 %v1095
    %1231 = vmatpush.msra.mxu0 %v1087
    %1232 = vmatpush.msra.mxu0 %v1079
    %1233 = vmatpush.msra.mxu0 %v1071
    %1234 = vmatpush.msra.mxu0 %v1063
    %1235 = vmatpush.msra.mxu0 %v1055
    %1236 = vmatmul.f32.gmra.mxu0 %v1053
    %v1237 = vpop.f32.mrf.mxu0
    %v1238 = vadd.f32 %v1185, %v1237
    %1239 = vdwg.mxu0
    %1240 = vmatpush.msra.mxu0 %v1176
    %1241 = vmatpush.msra.mxu0 %v1168
    %1242 = vmatpush.msra.mxu0 %v1160
    %1243 = vmatpush.msra.mxu0 %v1152
    %1244 = vmatpush.msra.mxu0 %v1144
    %1245 = vmatpush.msra.mxu0 %v1136
    %1246 = vmatpush.msra.mxu0 %v1128
    %1247 = vmatpush.msra.mxu0 %v1120
    %1248 = vmatpush.msra.mxu0 %v1112
    %1249 = vmatpush.msra.mxu0 %v1104
    %1250 = vmatpush.msra.mxu0 %v1096
    %1251 = vmatpush.msra.mxu0 %v1088
    %1252 = vmatpush.msra.mxu0 %v1080
    %1253 = vmatpush.msra.mxu0 %v1072
    %1254 = vmatpush.msra.mxu0 %v1064
    %1255 = vmatpush.msra.mxu0 %v1056
    %1256 = vmatmul.f32.gmra.mxu0 %v1053
    %v1257 = vpop.f32.mrf.mxu0
    %v1258 = vadd.f32 %v1186, %v1257
    %1259 = vdwg.mxu0
    %1260 = vmatpush.msra.mxu0 %v1177
    %1261 = vmatpush.msra.mxu0 %v1169
    %1262 = vmatpush.msra.mxu0 %v1161
    %1263 = vmatpush.msra.mxu0 %v1153
    %1264 = vmatpush.msra.mxu0 %v1145
    %1265 = vmatpush.msra.mxu0 %v1137
    %1266 = vmatpush.msra.mxu0 %v1129
    %1267 = vmatpush.msra.mxu0 %v1121
    %1268 = vmatpush.msra.mxu0 %v1113
    %1269 = vmatpush.msra.mxu0 %v1105
    %1270 = vmatpush.msra.mxu0 %v1097
    %1271 = vmatpush.msra.mxu0 %v1089
    %1272 = vmatpush.msra.mxu0 %v1081
    %1273 = vmatpush.msra.mxu0 %v1073
    %1274 = vmatpush.msra.mxu0 %v1065
    %1275 = vmatpush.msra.mxu0 %v1057
    %1276 = vmatmul.f32.gmra.mxu0 %v1053
    %v1277 = vpop.f32.mrf.mxu0
    %v1278 = vadd.f32 %v1187, %v1277
    %1279 = vdwg.mxu0
    %1280 = vmatpush.msra.mxu0 %v1178
    %1281 = vmatpush.msra.mxu0 %v1170
    %1282 = vmatpush.msra.mxu0 %v1162
    %1283 = vmatpush.msra.mxu0 %v1154
    %1284 = vmatpush.msra.mxu0 %v1146
    %1285 = vmatpush.msra.mxu0 %v1138
    %1286 = vmatpush.msra.mxu0 %v1130
    %1287 = vmatpush.msra.mxu0 %v1122
    %1288 = vmatpush.msra.mxu0 %v1114
    %1289 = vmatpush.msra.mxu0 %v1106
    %1290 = vmatpush.msra.mxu0 %v1098
    %1291 = vmatpush.msra.mxu0 %v1090
    %1292 = vmatpush.msra.mxu0 %v1082
    %1293 = vmatpush.msra.mxu0 %v1074
    %1294 = vmatpush.msra.mxu0 %v1066
    %1295 = vmatpush.msra.mxu0 %v1058
    %1296 = vmatmul.f32.gmra.mxu0 %v1053
    %v1297 = vpop.f32.mrf.mxu0
    %v1298 = vadd.f32 %v1188, %v1297
    %1299 = vdwg.mxu0
    %1300 = vmatpush.msra.mxu0 %v1179
    %1301 = vmatpush.msra.mxu0 %v1171
    %1302 = vmatpush.msra.mxu0 %v1163
    %1303 = vmatpush.msra.mxu0 %v1155
    %1304 = vmatpush.msra.mxu0 %v1147
    %1305 = vmatpush.msra.mxu0 %v1139
    %1306 = vmatpush.msra.mxu0 %v1131
    %1307 = vmatpush.msra.mxu0 %v1123
    %1308 = vmatpush.msra.mxu0 %v1115
    %1309 = vmatpush.msra.mxu0 %v1107
    %1310 = vmatpush.msra.mxu0 %v1099
    %1311 = vmatpush.msra.mxu0 %v1091
    %1312 = vmatpush.msra.mxu0 %v1083
    %1313 = vmatpush.msra.mxu0 %v1075
    %1314 = vmatpush.msra.mxu0 %v1067
    %1315 = vmatpush.msra.mxu0 %v1059
    %1316 = vmatmul.f32.gmra.mxu0 %v1053
    %v1317 = vpop.f32.mrf.mxu0
    %v1318 = vadd.f32 %v1189, %v1317
    %1319 = vdwg.mxu0
    %1320 = vmatpush.msra.mxu0 %v1180
    %1321 = vmatpush.msra.mxu0 %v1172
    %1322 = vmatpush.msra.mxu0 %v1164
    %1323 = vmatpush.msra.mxu0 %v1156
    %1324 = vmatpush.msra.mxu0 %v1148
    %1325 = vmatpush.msra.mxu0 %v1140
    %1326 = vmatpush.msra.mxu0 %v1132
    %1327 = vmatpush.msra.mxu0 %v1124
    %1328 = vmatpush.msra.mxu0 %v1116
    %1329 = vmatpush.msra.mxu0 %v1108
    %1330 = vmatpush.msra.mxu0 %v1100
    %1331 = vmatpush.msra.mxu0 %v1092
    %1332 = vmatpush.msra.mxu0 %v1084
    %1333 = vmatpush.msra.mxu0 %v1076
    %1334 = vmatpush.msra.mxu0 %v1068
    %1335 = vmatpush.msra.mxu0 %v1060
    %1336 = vmatmul.f32.gmra.mxu0 %v1053
    %v1337 = vpop.f32.mrf.mxu0
    %v1338 = vadd.f32 %v1190, %v1337
    %1339 = vdwg.mxu0
    %1340 = vmatpush.msra.mxu0 %v1181
    %1341 = vmatpush.msra.mxu0 %v1173
    %1342 = vmatpush.msra.mxu0 %v1165
    %1343 = vmatpush.msra.mxu0 %v1157
    %1344 = vmatpush.msra.mxu0 %v1149
    %1345 = vmatpush.msra.mxu0 %v1141
    %1346 = vmatpush.msra.mxu0 %v1133
    %1347 = vmatpush.msra.mxu0 %v1125
    %1348 = vmatpush.msra.mxu0 %v1117
    %1349 = vmatpush.msra.mxu0 %v1109
    %1350 = vmatpush.msra.mxu0 %v1101
    %1351 = vmatpush.msra.mxu0 %v1093
    %1352 = vmatpush.msra.mxu0 %v1085
    %1353 = vmatpush.msra.mxu0 %v1077
    %1354 = vmatpush.msra.mxu0 %v1069
    %1355 = vmatpush.msra.mxu0 %v1061
    %1356 = vmatmul.f32.gmra.mxu0 %v1053
    %v1357 = vpop.f32.mrf.mxu0
    %v1358 = vadd.f32 %v1191, %v1357
    %1359 = vdwg.mxu0
    %v1360 = vmax.f32 %v1218, 0.0
    %v1361 = vmax.f32 %v1238, 0.0
    %v1362 = vmax.f32 %v1258, 0.0
    %v1363 = vmax.f32 %v1278, 0.0
    %v1364 = vmax.f32 %v1298, 0.0
    %v1365 = vmax.f32 %v1318, 0.0
    %v1366 = vmax.f32 %v1338, 0.0
    %v1367 = vmax.f32 %v1358, 0.0
    %v1368 = vld [vmem:[%s8] sm:$0xff]
    %v1370 = vperm.slane %v1368, 0
    %v1371 = vperm.slane %v1368, 1
    %v1372 = vperm.slane %v1368, 2
    %v1373 = vperm.slane %v1368, 3
    %v1374 = vperm.slane %v1368, 4
    %v1375 = vperm.slane %v1368, 5
    %v1376 = vperm.slane %v1368, 6
    %v1377 = vperm.slane %v1368, 7
    %v1386 = vmul.f32 %v1360, %v1370
    %v1387 = vmul.f32 %v1361, %v1371
    %v1388 = vmul.f32 %v1362, %v1372
    %v1389 = vmul.f32 %v1363, %v1373
    %v1390 = vmul.f32 %v1364, %v1374
    %v1391 = vmul.f32 %v1365, %v1375
    %v1392 = vmul.f32 %v1366, %v1376
    %v1393 = vmul.f32 %v1367, %v1377
    %v1394 = vadd.f32 %v1386, %v1387
    %v1395 = vadd.f32 %v1394, %v1388
    %v1396 = vadd.f32 %v1395, %v1389
    %v1397 = vadd.f32 %v1396, %v1390
    %v1398 = vadd.f32 %v1397, %v1391
    %v1399 = vadd.f32 %v1398, %v1392
    %v1400 = vadd.f32 %v1399, %v1393
    %1401 = vadd.xlane.f32.xlu0 %v1400
    %v1402 = vpop.xlane.xlu0 %1401
    %v1403 = vld [vmem:[#allocation2] sm:$0x1]
    %v1405 = vperm.slane %v1403, 0
    %v1407 = vadd.f32 %v1402, %v1405
    %vm1408 = vcmask 7168
    %1409 = vst.msk [vmem:[%s10] sm:$0xff] %vm1408, %v1407
    // Predicated region
    $region46: #{lstm_linear_forward.1} parent=1 // pred_check
      _
    $region47: #{lstm_linear_forward.1} parent=1 // pred_check_branch
      %1411 = sbr.rel (0) target = $region49
    $region48: #{lstm_linear_forward.1} parent=1 // pred_region
      _
    $region49: #{lstm_linear_forward.1} parent=1 // pred_fallthru
      _
    // Predicated region
    $region50: #{lstm_linear_forward.1} parent=1 // pred_check
      _
    $region51: #{lstm_linear_forward.1} parent=1 // pred_check_branch
      %1413 = sbr.rel (0) target = $region53
    $region52: #{lstm_linear_forward.1} parent=1 // pred_region
      _
    $region53: #{lstm_linear_forward.1} parent=1 // pred_fallthru
      _
    %1414 = vsyncpa [#allocation4], 1

</llo_original>
